<compile_context>
chip_gen: v6e
topology: v6e:2x2x1
jax: 0.10.0
libtpu: 0.0.40
codegen_flags: <defaults>
</compile_context>

<pallas_src>
import functools

import jax
import jax.numpy as jnp
from jax import lax
from jax.experimental import pallas as pl
from jax.experimental.pallas import tpu as pltpu


def _ffn_kernel(x_ref, w1_ref, b1_ref, w2_ref, b2_ref, g_ref, bt_ref, o_ref,
                *, kernel_size, t_tile, seq_len, compute_dtype):
    """One (batch, time-tile) grid step.

    x_ref  : (1, 1, tT + 4*pad, Cin)  haloed input tile, float32
    w1_ref : (K*Cin, H)   b1_ref: (1, H)       (im2col weight layout, bf16)
    w2_ref : (K*H, Cin)   b2_ref: (1, Cin)
    g_ref  : (1, Cin)     bt_ref: (1, Cin)     LayerNorm affine (f32)
    o_ref  : (1, tT, Cin)
    """
    K = kernel_size
    pad = (K - 1) // 2
    tT = t_tile
    tH = tT + 2 * pad                      # hidden rows needed by this tile

    ti = pl.program_id(1)                  # time-tile index

    xw = x_ref[0, 0]                       # (tT + 4*pad, Cin), f32 (residual precision)
    xw_c = xw.astype(compute_dtype)

    # ---- Conv1d #1 as ONE fused MXU matmul over the (K * Cin) contraction ----
    a1 = jnp.concatenate([xw_c[k:k + tH, :] for k in range(K)], axis=-1)
    h = jnp.dot(a1, w1_ref[...], preferred_element_type=jnp.float32)
    h = h + b1_ref[...]                    # (1, H) broadcast, single f32 add

    # ReLU fused with zeroing of hidden rows outside [0, seq_len): the second
    # 'same' conv must see h == 0 beyond the true sequence (PyTorch semantics).
    row = ti * tT - pad + lax.broadcasted_iota(jnp.int32, (tH, 1), 0)
    valid = (row >= 0) & (row < seq_len)
    h = jnp.where(valid & (h > 0.0), h, 0.0)
    h_c = h.astype(compute_dtype)

    # ---- Conv1d #2 as ONE fused MXU matmul over the (K * H) contraction ----
    a2 = jnp.concatenate([h_c[k:k + tT, :] for k in range(K)], axis=-1)
    y = jnp.dot(a2, w2_ref[...], preferred_element_type=jnp.float32)
    y = y + b2_ref[...]                    # (1, Cin)

    # TODO(synk): dropout is identity in eval mode; training-mode dropout not implemented.

    # ---- residual add + LayerNorm over channels (all f32) ----
    y = y + xw[2 * pad:2 * pad + tT, :]
    mean = jnp.mean(y, axis=-1, keepdims=True)
    cen = y - mean
    var = jnp.mean(cen * cen, axis=-1, keepdims=True)
    out = cen * lax.rsqrt(var + 1e-5) * g_ref[...] + bt_ref[...]

    o_ref[0, :, :] = out.astype(o_ref.dtype)


def positionwise_feed_forward(x, w1, b1, w2, b2, gamma, beta, kernel_size,
                              *, t_tile=256, compute_dtype=jnp.bfloat16):
    """x: (B, T, Cin).  w1: (K, Cin, H), w2: (K, H, Cin) (PyTorch (Cout,Cin,K) transposed)."""
    B, T, Cin = x.shape
    K = kernel_size
    H = w1.shape[2]
    pad = (K - 1) // 2

    # --- time tiling: bounds the VMEM working set and gives the grid B*nT
    #     parallel steps (keeps both v7x TensorCores busy). ---
    tT = min(t_tile, T)
    if tT < T:                              # multi-tile -> keep blocks sublane aligned
        tT = max(8, (tT // 8) * 8)
    nT = -(-T // tT)
    T_full = nT * tT
    tW = tT + 4 * pad                       # x halo: 2*pad per side (two stacked convs)

    # Zero-pad time and gather overlapping per-tile windows once, outside the
    # kernel.  This single haloed stream replaces BOTH the old x_pad stream and
    # the separate residual stream (the residual is sliced out in-kernel);
    # extra HBM traffic is only ~(4*pad/tT) of x.
    x_padded = jnp.pad(x, ((0, 0), (2 * pad, (T_full - T) + 2 * pad), (0, 0)))
    win = jnp.arange(nT)[:, None] * tT + jnp.arange(tW)[None, :]     # (nT, tW)
    x_tiles = x_padded[:, win, :]                                     # (B, nT, tW, Cin)

    # im2col weight layout: conv taps folded into the contraction dim; bf16 for MXU.
    w1f = w1.reshape(K * Cin, H).astype(compute_dtype)
    w2f = w2.reshape(K * H, Cin).astype(compute_dtype)
    b1_2d = b1.reshape(1, H).astype(jnp.float32)
    b2_2d = b2.reshape(1, Cin).astype(jnp.float32)
    g_2d = gamma.reshape(1, Cin).astype(jnp.float32)
    bt_2d = beta.reshape(1, Cin).astype(jnp.float32)

    kernel = functools.partial(_ffn_kernel, kernel_size=K, t_tile=tT,
                               seq_len=T, compute_dtype=compute_dtype)

    # NOTE: for real FastSpeech2 weight sizes the constant-index weight blocks
    # could additionally be single-buffered (pipeline_mode=pl.Buffered(1)) to
    # halve their VMEM footprint on v7x.
    out_full = pl.pallas_call(
        kernel,
        out_shape=jax.ShapeDtypeStruct((B, T_full, Cin), x.dtype),
        grid_spec=pltpu.PrefetchScalarGridSpec(
            num_scalar_prefetch=0,
            grid=(B, nT),
            in_specs=[
                pl.BlockSpec((1, 1, tW, Cin), lambda b, i: (b, i, 0, 0)),   # haloed x tile
                pl.BlockSpec((K * Cin, H), lambda b, i: (0, 0)),            # w1 (im2col)
                pl.BlockSpec((1, H), lambda b, i: (0, 0)),                  # b1
                pl.BlockSpec((K * H, Cin), lambda b, i: (0, 0)),            # w2 (im2col)
                pl.BlockSpec((1, Cin), lambda b, i: (0, 0)),                # b2
                pl.BlockSpec((1, Cin), lambda b, i: (0, 0)),                # gamma
                pl.BlockSpec((1, Cin), lambda b, i: (0, 0)),                # beta
            ],
            out_specs=pl.BlockSpec((1, tT, Cin), lambda b, i: (b, i, 0)),
        ),
        compiler_params=pltpu.CompilerParams(
            dimension_semantics=("parallel", "parallel"),
            vmem_limit_bytes=48 * 1024 * 1024),
    )(x_tiles, w1f, b1_2d, w2f, b2_2d, g_2d, bt_2d)

    return out_full[:, :T, :]


def _reference(x, w1, b1, w2, b2, gamma, beta, kernel_size):
    """Plain-JAX reference using lax conv in NCW layout (matches PyTorch)."""
    pad = (kernel_size - 1) // 2
    # (K, Cin, Cout) -> PyTorch-style (Cout, Cin, K)
    w1_t = jnp.transpose(w1, (2, 1, 0))
    w2_t = jnp.transpose(w2, (2, 1, 0))
    x_ncw = jnp.transpose(x, (0, 2, 1))
    h = lax.conv_general_dilated(x_ncw, w1_t, (1,), [(pad, pad)],
                                 dimension_numbers=("NCH", "OIH", "NCH"),
                                 precision=lax.Precision.HIGHEST)
    h = jnp.maximum(h + b1[None, :, None], 0.0)
    y = lax.conv_general_dilated(h, w2_t, (1,), [(pad, pad)],
                                 dimension_numbers=("NCH", "OIH", "NCH"),
                                 precision=lax.Precision.HIGHEST)
    y = y + b2[None, :, None]
    y = jnp.transpose(y, (0, 2, 1)) + x
    mean = jnp.mean(y, axis=-1, keepdims=True)
    var = jnp.mean((y - mean) ** 2, axis=-1, keepdims=True)
    return (y - mean) * lax.rsqrt(var + 1e-5) * gamma + beta


if __name__ == "__main__":
    # Small but lane-dense config: channels kept a multiple of 128 so the
    # channel-last loads/stores are unmasked (real FastSpeech2 uses C=256,
    # H=1024, K=9); T=128 with t_tile=64 exercises the halo'd time tiling.
    in_dim, hidden_dim, kernel_size, dropout = 128, 256, 3, 0.1
    B, T = 2, 128

    key = jax.random.PRNGKey(0)
    kx, k1, kb1, k2, kb2 = jax.random.split(key, 5)

    x = jax.random.normal(kx, (B, T, in_dim), jnp.float32)
    # Conv weights stored as (K, Cin, Cout); PyTorch layout is (Cout, Cin, K).
    w1 = jax.random.normal(k1, (kernel_size, in_dim, hidden_dim), jnp.float32) * 0.05
    b1 = jax.random.normal(kb1, (hidden_dim,), jnp.float32) * 0.05
    w2 = jax.random.normal(k2, (kernel_size, hidden_dim, in_dim), jnp.float32) * 0.05
    b2 = jax.random.normal(kb2, (in_dim,), jnp.float32) * 0.05
    gamma = jnp.ones((in_dim,), jnp.float32)
    beta = jnp.zeros((in_dim,), jnp.float32)

    out = positionwise_feed_forward(x, w1, b1, w2, b2, gamma, beta, kernel_size,
                                    t_tile=64, compute_dtype=jnp.bfloat16)
    out = jax.block_until_ready(out)

    ref = _reference(x, w1, b1, w2, b2, gamma, beta, kernel_size)
    assert out.shape == (B, T, in_dim)
    # bf16 MXU operands (f32 accumulation; residual + LayerNorm in f32) give
    # ~1e-2 worst-case deviation vs. the full-f32 reference.
    assert jnp.allclose(out, ref, atol=5e-2, rtol=5e-2), "mismatch vs reference"

    print("KERNEL_OK")
</pallas_src>

<mosaic_0001>
module attributes {stable_mosaic.version = 11 : i64} {
  func.func @_ffn_kernel(%arg0: i32, %arg1: i32, %arg2: memref<1x1x68x128xf32, #tpu.memory_space<vmem>>, %arg3: memref<384x256xbf16, #tpu.memory_space<vmem>>, %arg4: memref<1x256xf32, #tpu.memory_space<vmem>>, %arg5: memref<768x128xbf16, #tpu.memory_space<vmem>>, %arg6: memref<1x128xf32, #tpu.memory_space<vmem>>, %arg7: memref<1x128xf32, #tpu.memory_space<vmem>>, %arg8: memref<1x128xf32, #tpu.memory_space<vmem>>, %arg9: memref<1x64x128xf32, #tpu.memory_space<vmem>>) attributes {dimension_semantics = [#tpu.dimension_semantics<parallel>, #tpu.dimension_semantics<parallel>], iteration_bounds = array<i64: 2, 2>, scalar_prefetch = 0 : i64, scratch_operands = 0 : i64, tpu.core_type = #tpu.core_type<tc>, window_params = [{transform_indices = @transform_0, window_bounds = array<i64: 1, 1, 68, 128>}, {pipeline_mode = #tpu.pipeline_mode<synchronous>, transform_indices = @transform_1, window_bounds = array<i64: 384, 256>}, {pipeline_mode = #tpu.pipeline_mode<synchronous>, transform_indices = @transform_2, window_bounds = array<i64: 1, 256>}, {pipeline_mode = #tpu.pipeline_mode<synchronous>, transform_indices = @transform_3, window_bounds = array<i64: 768, 128>}, {pipeline_mode = #tpu.pipeline_mode<synchronous>, transform_indices = @transform_4, window_bounds = array<i64: 1, 128>}, {pipeline_mode = #tpu.pipeline_mode<synchronous>, transform_indices = @transform_5, window_bounds = array<i64: 1, 128>}, {pipeline_mode = #tpu.pipeline_mode<synchronous>, transform_indices = @transform_6, window_bounds = array<i64: 1, 128>}, {transform_indices = @transform_7, window_bounds = array<i64: 1, 64, 128>}]} {
    %c0 = arith.constant 0 : index
    %c0_0 = arith.constant 0 : index
    %c0_1 = arith.constant 0 : index
    %c0_2 = arith.constant 0 : index
    %0 = vector.load %arg2[%c0, %c0_0, %c0_1, %c0_2] : memref<1x1x68x128xf32, #tpu.memory_space<vmem>>, vector<1x1x68x128xf32>
    %1 = vector.shape_cast %0 : vector<1x1x68x128xf32> to vector<68x128xf32>
    %2 = arith.truncf %1 : vector<68x128xf32> to vector<68x128xbf16>
    %3 = vector.extract_strided_slice %2 {offsets = [0, 0], sizes = [66, 128], strides = [1, 1]} : vector<68x128xbf16> to vector<66x128xbf16>
    %4 = vector.extract_strided_slice %2 {offsets = [1, 0], sizes = [66, 128], strides = [1, 1]} : vector<68x128xbf16> to vector<66x128xbf16>
    %5 = vector.extract_strided_slice %2 {offsets = [2, 0], sizes = [66, 128], strides = [1, 1]} : vector<68x128xbf16> to vector<66x128xbf16>
    %6 = tpu.concatenate %3, %4, %5 in 1 : vector<66x128xbf16>, vector<66x128xbf16>, vector<66x128xbf16> -> vector<66x384xbf16>
    %c0_3 = arith.constant 0 : index
    %c0_4 = arith.constant 0 : index
    %7 = vector.load %arg3[%c0_3, %c0_4] : memref<384x256xbf16, #tpu.memory_space<vmem>>, vector<384x256xbf16>
    %cst = arith.constant dense<0.000000e+00> : vector<66x256xf32>
    %8 = tpu.matmul %6, %7, %cst {dimension_numbers = #tpu.dot_dimension_numbers<[1], [0], [0], [1], [0, 0, 1, 1], [], []>} : vector<66x384xbf16>, vector<384x256xbf16>, vector<66x256xf32> -> vector<66x256xf32>
    %c0_5 = arith.constant 0 : index
    %c0_6 = arith.constant 0 : index
    %9 = vector.load %arg4[%c0_5, %c0_6] : memref<1x256xf32, #tpu.memory_space<vmem>>, vector<1x256xf32>
    %10 = vector.broadcast %9 : vector<1x256xf32> to vector<66x256xf32>
    %11 = arith.addf %8, %10 : vector<66x256xf32>
    %c64_i32 = arith.constant 64 : i32
    %12 = arith.muli %arg1, %c64_i32 : i32
    %c1_i32 = arith.constant 1 : i32
    %13 = arith.subi %12, %c1_i32 : i32
    %14 = tpu.iota {dimensions = array<i32: 0>} : vector<66x1xi32>
    %15 = vector.broadcast %13 : i32 to vector<66x1xi32>
    %16 = arith.addi %15, %14 : vector<66x1xi32>
    %c0_i32 = arith.constant 0 : i32
    %17 = vector.broadcast %c0_i32 : i32 to vector<66x1xi32>
    %18 = arith.cmpi sge, %16, %17 : vector<66x1xi32>
    %c128_i32 = arith.constant 128 : i32
    %19 = vector.broadcast %c128_i32 : i32 to vector<66x1xi32>
    %20 = arith.cmpi slt, %16, %19 : vector<66x1xi32>
    %21 = arith.andi %18, %20 : vector<66x1xi1>
    %cst_7 = arith.constant 0.000000e+00 : f32
    %22 = vector.broadcast %cst_7 : f32 to vector<66x256xf32>
    %23 = arith.cmpf ogt, %11, %22 : vector<66x256xf32>
    %24 = vector.broadcast %21 : vector<66x1xi1> to vector<66x256xi1>
    %25 = arith.andi %24, %23 : vector<66x256xi1>
    %cst_8 = arith.constant 0.000000e+00 : f32
    %26 = vector.broadcast %cst_8 : f32 to vector<66x256xf32>
    %27 = arith.select %25, %11, %26 : vector<66x256xi1>, vector<66x256xf32>
    %28 = arith.truncf %27 : vector<66x256xf32> to vector<66x256xbf16>
    %29 = vector.extract_strided_slice %28 {offsets = [0, 0], sizes = [64, 256], strides = [1, 1]} : vector<66x256xbf16> to vector<64x256xbf16>
    %30 = vector.extract_strided_slice %28 {offsets = [1, 0], sizes = [64, 256], strides = [1, 1]} : vector<66x256xbf16> to vector<64x256xbf16>
    %31 = vector.extract_strided_slice %28 {offsets = [2, 0], sizes = [64, 256], strides = [1, 1]} : vector<66x256xbf16> to vector<64x256xbf16>
    %32 = tpu.concatenate %29, %30, %31 in 1 : vector<64x256xbf16>, vector<64x256xbf16>, vector<64x256xbf16> -> vector<64x768xbf16>
    %c0_9 = arith.constant 0 : index
    %c0_10 = arith.constant 0 : index
    %33 = vector.load %arg5[%c0_9, %c0_10] : memref<768x128xbf16, #tpu.memory_space<vmem>>, vector<768x128xbf16>
    %cst_11 = arith.constant dense<0.000000e+00> : vector<64x128xf32>
    %34 = tpu.matmul %32, %33, %cst_11 {dimension_numbers = #tpu.dot_dimension_numbers<[1], [0], [0], [1], [0, 0, 1, 1], [], []>} : vector<64x768xbf16>, vector<768x128xbf16>, vector<64x128xf32> -> vector<64x128xf32>
    %c0_12 = arith.constant 0 : index
    %c0_13 = arith.constant 0 : index
    %35 = vector.load %arg6[%c0_12, %c0_13] : memref<1x128xf32, #tpu.memory_space<vmem>>, vector<1x128xf32>
    %36 = vector.broadcast %35 : vector<1x128xf32> to vector<64x128xf32>
    %37 = arith.addf %34, %36 : vector<64x128xf32>
    %38 = vector.extract_strided_slice %1 {offsets = [2, 0], sizes = [64, 128], strides = [1, 1]} : vector<68x128xf32> to vector<64x128xf32>
    %39 = arith.addf %37, %38 : vector<64x128xf32>
    %cst_14 = arith.constant dense<0.000000e+00> : vector<64xf32>
    %40 = vector.multi_reduction <add>, %39, %cst_14 [1] : vector<64x128xf32> to vector<64xf32>
    %41 = vector.shape_cast %40 : vector<64xf32> to vector<64x1xf32>
    %cst_15 = arith.constant 1.280000e+02 : f32
    %42 = vector.broadcast %cst_15 : f32 to vector<64x1xf32>
    %43 = arith.divf %41, %42 : vector<64x1xf32>
    %44 = vector.broadcast %43 : vector<64x1xf32> to vector<64x128xf32>
    %45 = arith.subf %39, %44 : vector<64x128xf32>
    %46 = arith.mulf %45, %45 : vector<64x128xf32>
    %cst_16 = arith.constant dense<0.000000e+00> : vector<64xf32>
    %47 = vector.multi_reduction <add>, %46, %cst_16 [1] : vector<64x128xf32> to vector<64xf32>
    %48 = vector.shape_cast %47 : vector<64xf32> to vector<64x1xf32>
    %cst_17 = arith.constant 1.280000e+02 : f32
    %49 = vector.broadcast %cst_17 : f32 to vector<64x1xf32>
    %50 = arith.divf %48, %49 : vector<64x1xf32>
    %cst_18 = arith.constant 9.99999974E-6 : f32
    %51 = vector.broadcast %cst_18 : f32 to vector<64x1xf32>
    %52 = arith.addf %50, %51 : vector<64x1xf32>
    %53 = math.rsqrt %52 : vector<64x1xf32>
    %54 = vector.broadcast %53 : vector<64x1xf32> to vector<64x128xf32>
    %55 = arith.mulf %45, %54 : vector<64x128xf32>
    %c0_19 = arith.constant 0 : index
    %c0_20 = arith.constant 0 : index
    %56 = vector.load %arg7[%c0_19, %c0_20] : memref<1x128xf32, #tpu.memory_space<vmem>>, vector<1x128xf32>
    %57 = vector.broadcast %56 : vector<1x128xf32> to vector<64x128xf32>
    %58 = arith.mulf %55, %57 : vector<64x128xf32>
    %c0_21 = arith.constant 0 : index
    %c0_22 = arith.constant 0 : index
    %59 = vector.load %arg8[%c0_21, %c0_22] : memref<1x128xf32, #tpu.memory_space<vmem>>, vector<1x128xf32>
    %60 = vector.broadcast %59 : vector<1x128xf32> to vector<64x128xf32>
    %61 = arith.addf %58, %60 : vector<64x128xf32>
    %c0_23 = arith.constant 0 : index
    %c0_24 = arith.constant 0 : index
    %c0_25 = arith.constant 0 : index
    %62 = vector.load %arg9[%c0_23, %c0_24, %c0_25] : memref<1x64x128xf32, #tpu.memory_space<vmem>>, vector<1x64x128xf32>
    %63 = vector.shape_cast %62 : vector<1x64x128xf32> to vector<64x128xf32>
    %64 = vector.shape_cast %61 : vector<64x128xf32> to vector<1x64x128xf32>
    tpu.vector_store %arg9[%c0_23, %c0_24, %c0_25], %64 {strides = array<i32>} : memref<1x64x128xf32, #tpu.memory_space<vmem>>, vector<1x64x128xf32>,
    return
  }
  func.func @transform_0(%arg0: i32, %arg1: i32) -> (i32, i32, i32, i32) {
    %c0_i32 = arith.constant 0 : i32
    %c0_i32_0 = arith.constant 0 : i32
    %c0_i32_1 = arith.constant 0 : i32
    return %arg0, %arg1, %c0_i32, %c0_i32_0 : i32, i32, i32, i32
  }
  func.func @transform_1(%arg0: i32, %arg1: i32) -> (i32, i32) {
    %c0_i32 = arith.constant 0 : i32
    %c0_i32_0 = arith.constant 0 : i32
    %c0_i32_1 = arith.constant 0 : i32
    return %c0_i32, %c0_i32_0 : i32, i32
  }
  func.func @transform_2(%arg0: i32, %arg1: i32) -> (i32, i32) {
    %c0_i32 = arith.constant 0 : i32
    %c0_i32_0 = arith.constant 0 : i32
    %c0_i32_1 = arith.constant 0 : i32
    return %c0_i32, %c0_i32_0 : i32, i32
  }
  func.func @transform_3(%arg0: i32, %arg1: i32) -> (i32, i32) {
    %c0_i32 = arith.constant 0 : i32
    %c0_i32_0 = arith.constant 0 : i32
    %c0_i32_1 = arith.constant 0 : i32
    return %c0_i32, %c0_i32_0 : i32, i32
  }
  func.func @transform_4(%arg0: i32, %arg1: i32) -> (i32, i32) {
    %c0_i32 = arith.constant 0 : i32
    %c0_i32_0 = arith.constant 0 : i32
    %c0_i32_1 = arith.constant 0 : i32
    return %c0_i32, %c0_i32_0 : i32, i32
  }
  func.func @transform_5(%arg0: i32, %arg1: i32) -> (i32, i32) {
    %c0_i32 = arith.constant 0 : i32
    %c0_i32_0 = arith.constant 0 : i32
    %c0_i32_1 = arith.constant 0 : i32
    return %c0_i32, %c0_i32_0 : i32, i32
  }
  func.func @transform_6(%arg0: i32, %arg1: i32) -> (i32, i32) {
    %c0_i32 = arith.constant 0 : i32
    %c0_i32_0 = arith.constant 0 : i32
    %c0_i32_1 = arith.constant 0 : i32
    return %c0_i32, %c0_i32_0 : i32, i32
  }
  func.func @transform_7(%arg0: i32, %arg1: i32) -> (i32, i32, i32) {
    %c0_i32 = arith.constant 0 : i32
    %c0_i32_0 = arith.constant 0 : i32
    return %arg0, %arg1, %c0_i32 : i32, i32, i32
  }
}

</mosaic_0001>

<llo_original>
// kernel: tpu_custom_call.1
$region0: #{tpu_custom_call.1}
  #allocation0 [shape = 'u32[]', space=smem, size = 0x4, offset = 0x4, fixed_abs, tag = 'smem constant byte address 0x4 - core index']
  #allocation1 [shape = 'u32[144,128]{1,0:T(1,128)}', space=vmem, size = 0x12000, scoped, tag = 'internal scratch']
  %s0 = inlined_call_operand.vmem [shape: f32[2,2,68,128], index: 0, kind: input, shape index: {}]
  %s1 = inlined_call_operand.vmem [shape: bf16[384,256], index: 1, kind: input, shape index: {}]
  %s2 = inlined_call_operand.vmem [shape: f32[1,256], index: 2, kind: input, shape index: {}]
  %s3 = inlined_call_operand.hbm [shape: bf16[768,128], index: 3, kind: input, shape index: {}]
  %s4 = inlined_call_operand.vmem [shape: f32[1,128], index: 4, kind: input, shape index: {}]
  %s5 = inlined_call_operand.vmem [shape: f32[1,128], index: 5, kind: input, shape index: {}]
  %s6 = inlined_call_operand.vmem [shape: f32[1,128], index: 6, kind: input, shape index: {}]
  %s7 = inlined_call_operand.hbm [shape: f32[2,128,128], index: 7, kind: output, shape index: {}]
  %s8 = sld [smem:[#allocation0]]
  $region65: #{tpu_custom_call.1} parent=0
    _
  %s10 = ssub.s32 1, %s8
  %s11 = scalar_select 0, %s10, %s8
  $region1: #{tpu_custom_call.1} parent=0
    #allocation2 [shape = 'u8[196608]{0}', space=vmem, size = 0x30000, scoped, tag = 'input window, operand 3, single buffered']
    #allocation3 [shape = 's32[2]{0}', space=sflag, size = 0x8, scoped, tag = 'scoped memory for tpu_custom_call.1']
    #allocation4 [shape = 's32[2]{0}', space=sflag, size = 0x8, scoped, tag = 'scoped memory for tpu_custom_call.1']
    #allocation5 [shape = 'u8[65536]{0}', space=vmem, size = 0x10000, scoped, tag = 'output window, operand 0']
    %12 = vsyncpa [#allocation3], 0
    %13 = vsyncpa [#allocation4], 0
    %s14 = scalar_lea.sflag [#allocation4], 1
    %15 = vsyncpa %s14, 0
    loop: start=0, step=1, limit=6
    $region2: #{tpu_custom_call.1} parent=1 // loop_pre_header
      _
    $region3: #{tpu_custom_call.1} parent=1 // loop_header
      %s17 = sphi 0, %s21
      %p18 = scmp.ge.s32.totalorder %s17, 6
      %s24 = sphi 0, %s36
      %s25 = sphi 0, %s32
      %s26 = sphi 0, %s24
      %s27 = sphi 0, %s25
      %s28 = sphi 0, %s26
      %s29 = sphi 0, %s27
      %s41 = sphi 0, %s43
      %s44 = sphi 0, %s41
      %s45 = sphi 0, %s44
      %s61 = sphi 0, %s45
      %s65 = sphi 0, %s65
      %s67 = sphi 0, %s65
      %s68 = sphi 0, %s67
      %s82 = sphi 0, %s68
      %s86 = sphi 0, %s86
      %s88 = sphi 0, %s86
      %s89 = sphi 0, %s88
      %s103 = sphi 0, %s89
      %s107 = sphi 0, %s107
      %s109 = sphi 0, %s107
      %s110 = sphi 0, %s109
      %s124 = sphi 0, %s110
      %s128 = sphi 0, %s128
      %s130 = sphi 0, %s128
      %s131 = sphi 0, %s130
      %s145 = sphi 0, %s131
      %s149 = sphi 0, %s149
      %s151 = sphi 0, %s149
      %s152 = sphi 0, %s151
      %s166 = sphi 0, %s152
      %s170 = sphi 0, %s170
      %s172 = sphi 0, %s170
      %s173 = sphi 0, %s172
      %s187 = sphi 0, %s173
      %s195 = sphi 0, %s197
      %s198 = sphi 0, %s195
      %s199 = sphi 0, %s198
      %s215 = sphi 0, %s199
    $region4: #{tpu_custom_call.1} parent=1 // loop_header_branch
      %20 = sbr.rel (%p18) target = $region8
    $region5: #{tpu_custom_call.1} parent=1 // loop_body
      %s22 = ssub.s32 %s17, 1
      %s23 = ssub.s32 %s17, 2
      %s30 = sadd.s32 1, %s25
      %p31 = scmp.ge.s32.totalorder %s30, 2
      %s32 = scalar_select %p31, 0, %s30
      %s33 = sadd.s32 1, %s24
      %s34 = scalar_select %p31, %s33, %s24
      %p35 = scmp.ge.s32.totalorder %s34, 2
      %s36 = scalar_select %p35, 0, %s34
      %s37 = ssub.s32 %s24, %s36
      %s38 = ssub.s32 %s25, %s32
      %s39 = sor.u32 %s37, %s38
      %p40 = scmp.eq.s32.totalorder %s39, 0
      %s42 = sadd.s32 %s41, 1
      %s43 = scalar_select %p40, %s41, %s42
      %p46 = pneg %p40
      %p47 = scmp.eq.s32.totalorder %s17, 3
      %p48 = por %p46, %p47
      %p49 = scmp.ne.s32.totalorder %s41, %s44
      %p50 = scmp.eq.s32.totalorder %s17, 0
      %p51 = por %p49, %p50
      %p52 = scmp.ne.s32.totalorder %s41, %s44
      %p53 = scmp.eq.s32.totalorder %s22, 3
      %p54 = por %p52, %p53
      %p55 = scmp.ne.s32.totalorder %s44, %s45
      %p56 = scmp.eq.s32.totalorder %s22, 0
      %p57 = por %p55, %p56
      %p58 = scmp.ne.s32.totalorder %s44, %s45
      %p59 = scmp.eq.s32.totalorder %s23, 3
      %p60 = por %p58, %p59
      %p62 = scmp.ne.s32.totalorder %s45, %s61
      %p63 = scmp.eq.s32.totalorder %s23, 0
      %p64 = por %p62, %p63
      %s66 = sadd.s32 %s65, 1
      %p69 = scmp.eq.s32.totalorder %s17, 3
      %p70 = scmp.ne.s32.totalorder %s65, %s67
      %p71 = scmp.eq.s32.totalorder %s17, 0
      %p72 = por %p70, %p71
      %p73 = scmp.ne.s32.totalorder %s65, %s67
      %p74 = scmp.eq.s32.totalorder %s22, 3
      %p75 = por %p73, %p74
      %p76 = scmp.ne.s32.totalorder %s67, %s68
      %p77 = scmp.eq.s32.totalorder %s22, 0
      %p78 = por %p76, %p77
      %p79 = scmp.ne.s32.totalorder %s67, %s68
      %p80 = scmp.eq.s32.totalorder %s23, 3
      %p81 = por %p79, %p80
      %p83 = scmp.ne.s32.totalorder %s68, %s82
      %p84 = scmp.eq.s32.totalorder %s23, 0
      %p85 = por %p83, %p84
      %s87 = sadd.s32 %s86, 1
      %p90 = scmp.eq.s32.totalorder %s17, 3
      %p91 = scmp.ne.s32.totalorder %s86, %s88
      %p92 = scmp.eq.s32.totalorder %s17, 0
      %p93 = por %p91, %p92
      %p94 = scmp.ne.s32.totalorder %s86, %s88
      %p95 = scmp.eq.s32.totalorder %s22, 3
      %p96 = por %p94, %p95
      %p97 = scmp.ne.s32.totalorder %s88, %s89
      %p98 = scmp.eq.s32.totalorder %s22, 0
      %p99 = por %p97, %p98
      %p100 = scmp.ne.s32.totalorder %s88, %s89
      %p101 = scmp.eq.s32.totalorder %s23, 3
      %p102 = por %p100, %p101
      %p104 = scmp.ne.s32.totalorder %s89, %s103
      %p105 = scmp.eq.s32.totalorder %s23, 0
      %p106 = por %p104, %p105
      %s108 = sadd.s32 %s107, 1
      %p111 = scmp.eq.s32.totalorder %s17, 3
      %p112 = scmp.ne.s32.totalorder %s107, %s109
      %p113 = scmp.eq.s32.totalorder %s17, 0
      %p114 = por %p112, %p113
      %p115 = scmp.ne.s32.totalorder %s107, %s109
      %p116 = scmp.eq.s32.totalorder %s22, 3
      %p117 = por %p115, %p116
      %p118 = scmp.ne.s32.totalorder %s109, %s110
      %p119 = scmp.eq.s32.totalorder %s22, 0
      %p120 = por %p118, %p119
      %p121 = scmp.ne.s32.totalorder %s109, %s110
      %p122 = scmp.eq.s32.totalorder %s23, 3
      %p123 = por %p121, %p122
      %p125 = scmp.ne.s32.totalorder %s110, %s124
      %p126 = scmp.eq.s32.totalorder %s23, 0
      %p127 = por %p125, %p126
      %s129 = sadd.s32 %s128, 1
      %p132 = scmp.eq.s32.totalorder %s17, 3
      %p133 = scmp.ne.s32.totalorder %s128, %s130
      %p134 = scmp.eq.s32.totalorder %s17, 0
      %p135 = por %p133, %p134
      %p136 = scmp.ne.s32.totalorder %s128, %s130
      %p137 = scmp.eq.s32.totalorder %s22, 3
      %p138 = por %p136, %p137
      %p139 = scmp.ne.s32.totalorder %s130, %s131
      %p140 = scmp.eq.s32.totalorder %s22, 0
      %p141 = por %p139, %p140
      %p142 = scmp.ne.s32.totalorder %s130, %s131
      %p143 = scmp.eq.s32.totalorder %s23, 3
      %p144 = por %p142, %p143
      %p146 = scmp.ne.s32.totalorder %s131, %s145
      %p147 = scmp.eq.s32.totalorder %s23, 0
      %p148 = por %p146, %p147
      %s150 = sadd.s32 %s149, 1
      %p153 = scmp.eq.s32.totalorder %s17, 3
      %p154 = scmp.ne.s32.totalorder %s149, %s151
      %p155 = scmp.eq.s32.totalorder %s17, 0
      %p156 = por %p154, %p155
      %p157 = scmp.ne.s32.totalorder %s149, %s151
      %p158 = scmp.eq.s32.totalorder %s22, 3
      %p159 = por %p157, %p158
      %p160 = scmp.ne.s32.totalorder %s151, %s152
      %p161 = scmp.eq.s32.totalorder %s22, 0
      %p162 = por %p160, %p161
      %p163 = scmp.ne.s32.totalorder %s151, %s152
      %p164 = scmp.eq.s32.totalorder %s23, 3
      %p165 = por %p163, %p164
      %p167 = scmp.ne.s32.totalorder %s152, %s166
      %p168 = scmp.eq.s32.totalorder %s23, 0
      %p169 = por %p167, %p168
      %s171 = sadd.s32 %s170, 1
      %p174 = scmp.eq.s32.totalorder %s17, 3
      %p175 = scmp.ne.s32.totalorder %s170, %s172
      %p176 = scmp.eq.s32.totalorder %s17, 0
      %p177 = por %p175, %p176
      %p178 = scmp.ne.s32.totalorder %s170, %s172
      %p179 = scmp.eq.s32.totalorder %s22, 3
      %p180 = por %p178, %p179
      %p181 = scmp.ne.s32.totalorder %s172, %s173
      %p182 = scmp.eq.s32.totalorder %s22, 0
      %p183 = por %p181, %p182
      %p184 = scmp.ne.s32.totalorder %s172, %s173
      %p185 = scmp.eq.s32.totalorder %s23, 3
      %p186 = por %p184, %p185
      %p188 = scmp.ne.s32.totalorder %s173, %s187
      %p189 = scmp.eq.s32.totalorder %s23, 0
      %p190 = por %p188, %p189
      %s191 = ssub.s32 %s24, %s36
      %s192 = ssub.s32 %s25, %s32
      %s193 = sor.u32 %s191, %s192
      %p194 = scmp.eq.s32.totalorder %s193, 0
      %s196 = sadd.s32 %s195, 1
      %s197 = scalar_select %p194, %s195, %s196
      %p200 = pneg %p194
      %p201 = scmp.eq.s32.totalorder %s17, 3
      %p202 = por %p200, %p201
      %p203 = scmp.ne.s32.totalorder %s195, %s198
      %p204 = scmp.eq.s32.totalorder %s17, 0
      %p205 = por %p203, %p204
      %p206 = scmp.ne.s32.totalorder %s195, %s198
      %p207 = scmp.eq.s32.totalorder %s22, 3
      %p208 = por %p206, %p207
      %p209 = scmp.ne.s32.totalorder %s198, %s199
      %p210 = scmp.eq.s32.totalorder %s22, 0
      %p211 = por %p209, %p210
      %p212 = scmp.ne.s32.totalorder %s198, %s199
      %p213 = scmp.eq.s32.totalorder %s23, 3
      %p214 = por %p212, %p213
      %p216 = scmp.ne.s32.totalorder %s199, %s215
      %p217 = scmp.eq.s32.totalorder %s23, 0
      %p218 = por %p216, %p217
      %p219 = scmp.le.s32.totalorder 1, %s17
      %p220 = scmp.lt.s32.totalorder %s17, 5
      %p221 = pnand %p219, %p220
      %p222 = pneg %p221
      // Predicated region
      $region9: #{tpu_custom_call.1} parent=5 // pred_check
        _
      $region10: #{tpu_custom_call.1} parent=5 // pred_check_branch
        %224 = sbr.rel (%p221) target = $region12
      $region11: #{tpu_custom_call.1} parent=5 // pred_region
        %s225 = ssub.s32 %s17, 1
        // Predicated region
        $region13: #{tpu_custom_call.1} parent=11 // pred_check
          %p226 = pneg %p78
        $region14: #{tpu_custom_call.1} parent=11 // pred_check_branch
          %228 = sbr.rel (%p226) target = $region16
        $region15: #{tpu_custom_call.1} parent=11 // pred_region
          _
        $region16: #{tpu_custom_call.1} parent=11 // pred_fallthru
          _
        // Predicated region
        $region17: #{tpu_custom_call.1} parent=11 // pred_check
          %p229 = pneg %p99
        $region18: #{tpu_custom_call.1} parent=11 // pred_check_branch
          %231 = sbr.rel (%p229) target = $region20
        $region19: #{tpu_custom_call.1} parent=11 // pred_region
          _
        $region20: #{tpu_custom_call.1} parent=11 // pred_fallthru
          _
        // Predicated region
        $region21: #{tpu_custom_call.1} parent=11 // pred_check
          %p232 = pneg %p120
        $region22: #{tpu_custom_call.1} parent=11 // pred_check_branch
          %234 = sbr.rel (%p232) target = $region24
        $region23: #{tpu_custom_call.1} parent=11 // pred_region
          %s236 = ssub.s32 6144, 6144
          %237 = vsyncadd [#allocation3], %s236
          %s238 = sshll.u32 [#allocation2], 4
          %s239 = int_to_ptr.vmem [resolvable:$true] %s238
          %244 = dma.hbm_to_vmem [thread:$0]  %s3, 6144, %s239, [#allocation3], 64, 64, 4
        $region24: #{tpu_custom_call.1} parent=11 // pred_fallthru
          _
        // Predicated region
        $region25: #{tpu_custom_call.1} parent=11 // pred_check
          %p245 = pneg %p141
        $region26: #{tpu_custom_call.1} parent=11 // pred_check_branch
          %247 = sbr.rel (%p245) target = $region28
        $region27: #{tpu_custom_call.1} parent=11 // pred_region
          _
        $region28: #{tpu_custom_call.1} parent=11 // pred_fallthru
          _
        // Predicated region
        $region29: #{tpu_custom_call.1} parent=11 // pred_check
          %p248 = pneg %p162
        $region30: #{tpu_custom_call.1} parent=11 // pred_check_branch
          %250 = sbr.rel (%p248) target = $region32
        $region31: #{tpu_custom_call.1} parent=11 // pred_region
          _
        $region32: #{tpu_custom_call.1} parent=11 // pred_fallthru
          _
        // Predicated region
        $region33: #{tpu_custom_call.1} parent=11 // pred_check
          %p251 = pneg %p183
        $region34: #{tpu_custom_call.1} parent=11 // pred_check_branch
          %253 = sbr.rel (%p251) target = $region36
        $region35: #{tpu_custom_call.1} parent=11 // pred_region
          _
        $region36: #{tpu_custom_call.1} parent=11 // pred_fallthru
          _
      $region12: #{tpu_custom_call.1} parent=5 // pred_fallthru
        _
      %p254 = scmp.lt.s32.totalorder %s17, 4
      // Predicated region
      $region37: #{tpu_custom_call.1} parent=5 // pred_check
        %p255 = pneg %p254
      $region38: #{tpu_custom_call.1} parent=5 // pred_check_branch
        %257 = sbr.rel (%p255) target = $region40
      $region39: #{tpu_custom_call.1} parent=5 // pred_region
        // Predicated region
        $region41: #{tpu_custom_call.1} parent=39 // pred_check
          %p258 = pneg %p51
        $region42: #{tpu_custom_call.1} parent=39 // pred_check_branch
          %260 = sbr.rel (%p258) target = $region44
        $region43: #{tpu_custom_call.1} parent=39 // pred_region
          %p261 = scmp.lt.s32.totalorder %s24, 1
          %s262 = scalar_select %p261, %s24, 1
          %p263 = scmp.lt.s32.totalorder %s25, 1
          %s264 = scalar_select %p263, %s25, 1
          %s265 = smul.addr %s264, 9
          %s266 = smul.addr %s262, 18
          %s267 = sadd.s32 %s265, %s266
          %s268 = smul.addr %s267, 8
          %s269 = scalar_lea.vmem %s0, %s268
        $region44: #{tpu_custom_call.1} parent=39 // pred_fallthru
          _
      $region40: #{tpu_custom_call.1} parent=5 // pred_fallthru
        _
      %p270 = scmp.le.s32.totalorder 1, %s17
      %p271 = scmp.lt.s32.totalorder %s17, 5
      %p272 = pnand %p270, %p271
      %p273 = pneg %p272
      // Predicated region
      $region45: #{tpu_custom_call.1} parent=5 // pred_check
        _
      $region46: #{tpu_custom_call.1} parent=5 // pred_check_branch
        %275 = sbr.rel (%p272) target = $region48
      $region47: #{tpu_custom_call.1} parent=5 // pred_region
        %s276 = ssub.s32 %s17, 1
        // Predicated region
        $region49: #{tpu_custom_call.1} parent=47 // pred_check
          %p277 = pneg %p120
        $region50: #{tpu_custom_call.1} parent=47 // pred_check_branch
          %279 = sbr.rel (%p277) target = $region52
        $region51: #{tpu_custom_call.1} parent=47 // pred_region
          %280 = dma.done [#allocation3], 6144
        $region52: #{tpu_custom_call.1} parent=47 // pred_fallthru
          _
        %p281 = scmp.lt.s32.totalorder %s26, 1
        %s282 = scalar_select %p281, %s26, 1
        %p283 = scmp.lt.s32.totalorder %s27, 1
        %s284 = scalar_select %p283, %s27, 1
        %s285 = smul.addr %s284, 9
        %s286 = smul.addr %s282, 18
        %s287 = sadd.s32 %s285, %s286
        %s288 = smul.addr %s287, 8
        %s289 = scalar_lea.vmem %s0, %s288
        %p290 = pneg %p57
        %p291 = pneg %p54
        %p292 = pneg %p78
        %p293 = pneg %p75
        %p294 = pneg %p99
        %p295 = pneg %p96
        %p296 = pneg %p120
        %p297 = pneg %p117
        %p298 = pneg %p141
        %p299 = pneg %p138
        %p300 = pneg %p162
        %p301 = pneg %p159
        %p302 = pneg %p183
        %p303 = pneg %p180
        %p304 = pneg %p211
        %p305 = pneg %p208
        %s306 = sand.u32 %s198, 1
        %s307 = scalar_lea.sflag [#allocation4], %s306
        %s308 = sand.u32 %s198, 1
        %s309 = smul.addr %s308, 64
        %s310 = scalar_lea.vmem [#allocation5], %s309
        %p311 = scmp.lt.s32.totalorder %s26, 1
        %s312 = scalar_select %p311, %s26, 1
        %p313 = scmp.lt.s32.totalorder %s27, 1
        %s314 = scalar_select %p313, %s27, 1
        %s315 = smul.addr %s314, 9
        %s316 = smul.addr %s312, 18
        %s317 = sadd.s32 %s315, %s316
        %s318 = smul.addr %s317, 8
        %s319 = scalar_lea.vmem %s0, %s318
        %s320 = smul.u32 8, %s27
        %v322 = vld [vmem:[%s319] sm:$0xff]
        %v323 = vld [vmem:[%s319 + $0x8] sm:$0xff]
        %v324 = vld [vmem:[%s319 + $0x10] sm:$0xff]
        %v325 = vld [vmem:[%s319 + $0x18] sm:$0xff]
        %v326 = vld [vmem:[%s319 + $0x20] sm:$0xff]
        %v327 = vld [vmem:[%s319 + $0x28] sm:$0xff]
        %v328 = vld [vmem:[%s319 + $0x30] sm:$0xff]
        %v329 = vld [vmem:[%s319 + $0x38] sm:$0xff]
        %v330 = vld [vmem:[%s319 + $0x40] sm:$0xf]
        %v331 = vpack.c.bf16 %v323, %v322
        %v332 = vpack.c.bf16 %v325, %v324
        %v333 = vpack.c.bf16 %v327, %v326
        %v334 = vpack.c.bf16 %v329, %v328
        %v335 = vpack.c.bf16 %v330, %v330
        %vm336 = vsmask.f32 7424
        %v338 = vshrl.u32 %v331, 16
        %v340 = vshll.u32 %v331, 16
        %v342 = vrot.slane %v340, 1
        %v343 = vor.u32 %v338, %v342
        %v345 = vshll.u32 %v332, 16
        %v347 = vrot.slane %v345, 1
        %v348 = vsel %vm336, %v343, %v347
        %v349 = vshrl.u32 %v332, 16
        %v351 = vor.u32 %v349, %v347
        %v353 = vshll.u32 %v333, 16
        %v355 = vrot.slane %v353, 1
        %v356 = vsel %vm336, %v351, %v355
        %v357 = vshrl.u32 %v333, 16
        %v359 = vor.u32 %v357, %v355
        %v361 = vshll.u32 %v334, 16
        %v363 = vrot.slane %v361, 1
        %v364 = vsel %vm336, %v359, %v363
        %v365 = vshrl.u32 %v334, 16
        %v367 = vor.u32 %v365, %v363
        %v369 = vshll.u32 %v335, 16
        %v371 = vrot.slane %v369, 1
        %v372 = vsel %vm336, %v367, %v371
        %v373 = vshrl.u32 %v335, 16
        %v375 = vor.u32 %v373, %v371
        %vm386 = vcmask 1046528
        %v387 = vrot.slane %v331, 1
        %v388 = vrot.slane %v332, 1
        %v389 = vsel %vm386, %v387, %v388
        %v390 = vrot.slane %v333, 1
        %v391 = vsel %vm386, %v388, %v390
        %v392 = vrot.slane %v334, 1
        %v393 = vsel %vm386, %v390, %v392
        %v394 = vrot.slane %v335, 1
        %v395 = vsel %vm386, %v392, %v394
        %v401 = vld [vmem:[%s1] sm:$0xff]
        %v402 = vld [vmem:[%s1 + $0x8] sm:$0xff]
        %v403 = vld [vmem:[%s1 + $0x10] sm:$0xff]
        %v404 = vld [vmem:[%s1 + $0x18] sm:$0xff]
        %v405 = vld [vmem:[%s1 + $0x20] sm:$0xff]
        %v406 = vld [vmem:[%s1 + $0x28] sm:$0xff]
        %v407 = vld [vmem:[%s1 + $0x30] sm:$0xff]
        %v408 = vld [vmem:[%s1 + $0x38] sm:$0xff]
        %v409 = vld [vmem:[%s1 + $0x40] sm:$0xff]
        %v410 = vld [vmem:[%s1 + $0x48] sm:$0xff]
        %v411 = vld [vmem:[%s1 + $0x50] sm:$0xff]
        %v412 = vld [vmem:[%s1 + $0x58] sm:$0xff]
        %v413 = vld [vmem:[%s1 + $0x60] sm:$0xff]
        %v414 = vld [vmem:[%s1 + $0x68] sm:$0xff]
        %v415 = vld [vmem:[%s1 + $0x70] sm:$0xff]
        %v416 = vld [vmem:[%s1 + $0x78] sm:$0xff]
        %v417 = vld [vmem:[%s1 + $0x80] sm:$0xff]
        %v418 = vld [vmem:[%s1 + $0x88] sm:$0xff]
        %v419 = vld [vmem:[%s1 + $0x90] sm:$0xff]
        %v420 = vld [vmem:[%s1 + $0x98] sm:$0xff]
        %v421 = vld [vmem:[%s1 + $0xa0] sm:$0xff]
        %v422 = vld [vmem:[%s1 + $0xa8] sm:$0xff]
        %v423 = vld [vmem:[%s1 + $0xb0] sm:$0xff]
        %v424 = vld [vmem:[%s1 + $0xb8] sm:$0xff]
        %v425 = vld [vmem:[%s1 + $0xc0] sm:$0xff]
        %v426 = vld [vmem:[%s1 + $0xc8] sm:$0xff]
        %v427 = vld [vmem:[%s1 + $0xd0] sm:$0xff]
        %v428 = vld [vmem:[%s1 + $0xd8] sm:$0xff]
        %v429 = vld [vmem:[%s1 + $0xe0] sm:$0xff]
        %v430 = vld [vmem:[%s1 + $0xe8] sm:$0xff]
        %v431 = vld [vmem:[%s1 + $0xf0] sm:$0xff]
        %v432 = vld [vmem:[%s1 + $0xf8] sm:$0xff]
        %v433 = vld [vmem:[%s1 + $0x100] sm:$0xff]
        %v434 = vld [vmem:[%s1 + $0x108] sm:$0xff]
        %v435 = vld [vmem:[%s1 + $0x110] sm:$0xff]
        %v436 = vld [vmem:[%s1 + $0x118] sm:$0xff]
        %v437 = vld [vmem:[%s1 + $0x120] sm:$0xff]
        %v438 = vld [vmem:[%s1 + $0x128] sm:$0xff]
        %v439 = vld [vmem:[%s1 + $0x130] sm:$0xff]
        %v440 = vld [vmem:[%s1 + $0x138] sm:$0xff]
        %v441 = vld [vmem:[%s1 + $0x140] sm:$0xff]
        %v442 = vld [vmem:[%s1 + $0x148] sm:$0xff]
        %v443 = vld [vmem:[%s1 + $0x150] sm:$0xff]
        %v444 = vld [vmem:[%s1 + $0x158] sm:$0xff]
        %v445 = vld [vmem:[%s1 + $0x160] sm:$0xff]
        %v446 = vld [vmem:[%s1 + $0x168] sm:$0xff]
        %v447 = vld [vmem:[%s1 + $0x170] sm:$0xff]
        %v448 = vld [vmem:[%s1 + $0x178] sm:$0xff]
        %v449 = vld [vmem:[%s2] sm:$0x3]
        %v451 = vlaneseq
        %v452 = vshrl.u32 %v451, 7
        %v453 = vsub.s32 0, %v452
        %v454 = vrot.slane %v449, %v453
        %v455 = vlaneseq
        %v456 = vshrl.u32 %v455, 7
        %v457 = vsub.s32 1, %v456
        %v458 = vrot.slane %v449, %v457
        %v509 = vunpack.c.l.b16 %v401
        %v510 = vunpack.c.h.b16 %v401
        %v511 = vunpack.c.l.b16 %v402
        %v512 = vunpack.c.h.b16 %v402
        %v513 = vunpack.c.l.b16 %v403
        %v514 = vunpack.c.h.b16 %v403
        %v515 = vunpack.c.l.b16 %v404
        %v516 = vunpack.c.h.b16 %v404
        %v517 = vunpack.c.l.b16 %v405
        %v518 = vunpack.c.h.b16 %v405
        %v519 = vunpack.c.l.b16 %v406
        %v520 = vunpack.c.h.b16 %v406
        %v521 = vunpack.c.l.b16 %v407
        %v522 = vunpack.c.h.b16 %v407
        %v523 = vunpack.c.l.b16 %v408
        %v524 = vunpack.c.h.b16 %v408
        %v525 = vunpack.c.l.b16 %v409
        %v526 = vunpack.c.h.b16 %v409
        %v527 = vunpack.c.l.b16 %v410
        %v528 = vunpack.c.h.b16 %v410
        %v529 = vunpack.c.l.b16 %v411
        %v530 = vunpack.c.h.b16 %v411
        %v531 = vunpack.c.l.b16 %v412
        %v532 = vunpack.c.h.b16 %v412
        %v533 = vunpack.c.l.b16 %v413
        %v534 = vunpack.c.h.b16 %v413
        %v535 = vunpack.c.l.b16 %v414
        %v536 = vunpack.c.h.b16 %v414
        %v537 = vunpack.c.l.b16 %v415
        %v538 = vunpack.c.h.b16 %v415
        %v539 = vunpack.c.l.b16 %v416
        %v540 = vunpack.c.h.b16 %v416
        %v541 = vunpack.c.l.b16 %v417
        %v542 = vunpack.c.h.b16 %v417
        %v543 = vunpack.c.l.b16 %v418
        %v544 = vunpack.c.h.b16 %v418
        %v545 = vunpack.c.l.b16 %v419
        %v546 = vunpack.c.h.b16 %v419
        %v547 = vunpack.c.l.b16 %v420
        %v548 = vunpack.c.h.b16 %v420
        %v549 = vunpack.c.l.b16 %v421
        %v550 = vunpack.c.h.b16 %v421
        %v551 = vunpack.c.l.b16 %v422
        %v552 = vunpack.c.h.b16 %v422
        %v553 = vunpack.c.l.b16 %v423
        %v554 = vunpack.c.h.b16 %v423
        %v555 = vunpack.c.l.b16 %v424
        %v556 = vunpack.c.h.b16 %v424
        %v557 = vunpack.c.l.b16 %v425
        %v558 = vunpack.c.h.b16 %v425
        %v559 = vunpack.c.l.b16 %v426
        %v560 = vunpack.c.h.b16 %v426
        %v561 = vunpack.c.l.b16 %v427
        %v562 = vunpack.c.h.b16 %v427
        %v563 = vunpack.c.l.b16 %v428
        %v564 = vunpack.c.h.b16 %v428
        %v565 = vunpack.c.l.b16 %v429
        %v566 = vunpack.c.h.b16 %v429
        %v567 = vunpack.c.l.b16 %v430
        %v568 = vunpack.c.h.b16 %v430
        %v569 = vunpack.c.l.b16 %v431
        %v570 = vunpack.c.h.b16 %v431
        %v571 = vunpack.c.l.b16 %v432
        %v572 = vunpack.c.h.b16 %v432
        %v573 = vunpack.c.l.b16 %v433
        %v574 = vunpack.c.h.b16 %v433
        %v575 = vunpack.c.l.b16 %v434
        %v576 = vunpack.c.h.b16 %v434
        %v577 = vunpack.c.l.b16 %v435
        %v578 = vunpack.c.h.b16 %v435
        %v579 = vunpack.c.l.b16 %v436
        %v580 = vunpack.c.h.b16 %v436
        %v581 = vunpack.c.l.b16 %v437
        %v582 = vunpack.c.h.b16 %v437
        %v583 = vunpack.c.l.b16 %v438
        %v584 = vunpack.c.h.b16 %v438
        %v585 = vunpack.c.l.b16 %v439
        %v586 = vunpack.c.h.b16 %v439
        %v587 = vunpack.c.l.b16 %v440
        %v588 = vunpack.c.h.b16 %v440
        %v589 = vunpack.c.l.b16 %v441
        %v590 = vunpack.c.h.b16 %v441
        %v591 = vunpack.c.l.b16 %v442
        %v592 = vunpack.c.h.b16 %v442
        %v593 = vunpack.c.l.b16 %v443
        %v594 = vunpack.c.h.b16 %v443
        %v595 = vunpack.c.l.b16 %v444
        %v596 = vunpack.c.h.b16 %v444
        %v597 = vunpack.c.l.b16 %v445
        %v598 = vunpack.c.h.b16 %v445
        %v599 = vunpack.c.l.b16 %v446
        %v600 = vunpack.c.h.b16 %v446
        %v601 = vunpack.c.l.b16 %v447
        %v602 = vunpack.c.h.b16 %v447
        %v603 = vunpack.c.l.b16 %v448
        %v604 = vunpack.c.h.b16 %v448
        %v605 = vpack.c.b16 %v511, %v509
        %v606 = vpack.c.b16 %v512, %v510
        %v607 = vpack.c.b16 %v515, %v513
        %v608 = vpack.c.b16 %v516, %v514
        %v609 = vpack.c.b16 %v519, %v517
        %v610 = vpack.c.b16 %v520, %v518
        %v611 = vpack.c.b16 %v523, %v521
        %v612 = vpack.c.b16 %v524, %v522
        %v613 = vpack.c.b16 %v527, %v525
        %v614 = vpack.c.b16 %v528, %v526
        %v615 = vpack.c.b16 %v531, %v529
        %v616 = vpack.c.b16 %v532, %v530
        %v617 = vpack.c.b16 %v535, %v533
        %v618 = vpack.c.b16 %v536, %v534
        %v619 = vpack.c.b16 %v539, %v537
        %v620 = vpack.c.b16 %v540, %v538
        %v621 = vpack.c.b16 %v543, %v541
        %v622 = vpack.c.b16 %v544, %v542
        %v623 = vpack.c.b16 %v547, %v545
        %v624 = vpack.c.b16 %v548, %v546
        %v625 = vpack.c.b16 %v551, %v549
        %v626 = vpack.c.b16 %v552, %v550
        %v627 = vpack.c.b16 %v555, %v553
        %v628 = vpack.c.b16 %v556, %v554
        %v629 = vpack.c.b16 %v559, %v557
        %v630 = vpack.c.b16 %v560, %v558
        %v631 = vpack.c.b16 %v563, %v561
        %v632 = vpack.c.b16 %v564, %v562
        %v633 = vpack.c.b16 %v567, %v565
        %v634 = vpack.c.b16 %v568, %v566
        %v635 = vpack.c.b16 %v571, %v569
        %v636 = vpack.c.b16 %v572, %v570
        %v637 = vpack.c.b16 %v575, %v573
        %v638 = vpack.c.b16 %v576, %v574
        %v639 = vpack.c.b16 %v579, %v577
        %v640 = vpack.c.b16 %v580, %v578
        %v641 = vpack.c.b16 %v583, %v581
        %v642 = vpack.c.b16 %v584, %v582
        %v643 = vpack.c.b16 %v587, %v585
        %v644 = vpack.c.b16 %v588, %v586
        %v645 = vpack.c.b16 %v591, %v589
        %v646 = vpack.c.b16 %v592, %v590
        %v647 = vpack.c.b16 %v595, %v593
        %v648 = vpack.c.b16 %v596, %v594
        %v649 = vpack.c.b16 %v599, %v597
        %v650 = vpack.c.b16 %v600, %v598
        %v651 = vpack.c.b16 %v603, %v601
        %v652 = vpack.c.b16 %v604, %v602
        %701 = vmatprep.subr.bf16.mxu0 %v620
        %702 = vmatpush1.bf16.msra.mxu0 %v619
        %703 = vmatprep.subr.bf16.mxu0 %v618
        %704 = vmatpush1.bf16.msra.mxu0 %v617
        %705 = vmatprep.subr.bf16.mxu0 %v616
        %706 = vmatpush1.bf16.msra.mxu0 %v615
        %707 = vmatprep.subr.bf16.mxu0 %v614
        %708 = vmatpush1.bf16.msra.mxu0 %v613
        %709 = vmatprep.subr.bf16.mxu0 %v612
        %710 = vmatpush1.bf16.msra.mxu0 %v611
        %711 = vmatprep.subr.bf16.mxu0 %v610
        %712 = vmatpush1.bf16.msra.mxu0 %v609
        %713 = vmatprep.subr.bf16.mxu0 %v608
        %714 = vmatpush1.bf16.msra.mxu0 %v607
        %715 = vmatprep.subr.bf16.mxu0 %v606
        %716 = vmatpush1.bf16.msra.mxu0 %v605
        %717 = vmatprep.subr.bf16.mxu0 %v636
        %718 = vmatpush2.bf16.msra.mxu0 %v635
        %719 = vmatprep.subr.bf16.mxu0 %v634
        %720 = vmatpush2.bf16.msra.mxu0 %v633
        %721 = vmatprep.subr.bf16.mxu0 %v632
        %722 = vmatpush2.bf16.msra.mxu0 %v631
        %723 = vmatprep.subr.bf16.mxu0 %v630
        %724 = vmatpush2.bf16.msra.mxu0 %v629
        %725 = vmatprep.subr.bf16.mxu0 %v628
        %726 = vmatpush2.bf16.msra.mxu0 %v627
        %727 = vmatprep.subr.bf16.mxu0 %v626
        %728 = vmatpush2.bf16.msra.mxu0 %v625
        %729 = vmatprep.subr.bf16.mxu0 %v624
        %730 = vmatpush2.bf16.msra.mxu0 %v623
        %731 = vmatprep.subr.bf16.mxu0 %v622
        %732 = vmatpush2.bf16.msra.mxu0 %v621
        %733 = vmatprep.mubr.bf16.mxu0 %v348
        %734 = vmatmul.mubr.bf16.gmra.mxu0 %v331
        %v735 = vpop.f32.mrf.mxu0
        %v736 = vadd.f32 %v454, %v735
        %v737 = vpop.f32.mrf.mxu0
        %v738 = vadd.f32 %v458, %v737
        %v739 = vpop.f32.mrf.mxu0
        %v740 = vadd.f32 %v454, %v739
        %v741 = vpop.f32.mrf.mxu0
        %v742 = vadd.f32 %v458, %v741
        %743 = vmatprep.mubr.bf16.mxu0 %v356
        %744 = vmatmul.mubr.bf16.gmra.mxu0 %v332
        %v745 = vpop.f32.mrf.mxu0
        %v746 = vadd.f32 %v454, %v745
        %v747 = vpop.f32.mrf.mxu0
        %v748 = vadd.f32 %v458, %v747
        %v749 = vpop.f32.mrf.mxu0
        %v750 = vadd.f32 %v454, %v749
        %v751 = vpop.f32.mrf.mxu0
        %v752 = vadd.f32 %v458, %v751
        %753 = vmatprep.mubr.bf16.mxu0 %v364
        %754 = vmatmul.mubr.bf16.gmra.mxu0 %v333
        %v755 = vpop.f32.mrf.mxu0
        %v756 = vadd.f32 %v454, %v755
        %v757 = vpop.f32.mrf.mxu0
        %v758 = vadd.f32 %v458, %v757
        %v759 = vpop.f32.mrf.mxu0
        %v760 = vadd.f32 %v454, %v759
        %v761 = vpop.f32.mrf.mxu0
        %v762 = vadd.f32 %v458, %v761
        %763 = vmatprep.mubr.bf16.mxu0 %v372
        %764 = vmatmul.mubr.bf16.gmra.mxu0 %v334
        %v765 = vpop.f32.mrf.mxu0
        %v766 = vadd.f32 %v454, %v765
        %v767 = vpop.f32.mrf.mxu0
        %v768 = vadd.f32 %v458, %v767
        %v769 = vpop.f32.mrf.mxu0
        %v770 = vadd.f32 %v454, %v769
        %v771 = vpop.f32.mrf.mxu0
        %v772 = vadd.f32 %v458, %v771
        %773 = vmatprep.mubr.bf16.mxu0 %v375
        %774 = vmatmul.mubr.bf16.gmra.mxu0 %v335
        %v775 = vpop.f32.mrf.mxu0
        %v776 = vadd.f32 %v454, %v775
        %v777 = vpop.f32.mrf.mxu0
        %v778 = vadd.f32 %v458, %v777
        %v779 = vpop.f32.mrf.mxu0
        %v780 = vpop.f32.mrf.mxu0
        %781 = vdwg.mxu0
        %782 = vmatprep.subr.bf16.mxu0 %v652
        %783 = vmatpush1.bf16.msra.mxu0 %v651
        %784 = vmatprep.subr.bf16.mxu0 %v650
        %785 = vmatpush1.bf16.msra.mxu0 %v649
        %786 = vmatprep.subr.bf16.mxu0 %v648
        %787 = vmatpush1.bf16.msra.mxu0 %v647
        %788 = vmatprep.subr.bf16.mxu0 %v646
        %789 = vmatpush1.bf16.msra.mxu0 %v645
        %790 = vmatprep.subr.bf16.mxu0 %v644
        %791 = vmatpush1.bf16.msra.mxu0 %v643
        %792 = vmatprep.subr.bf16.mxu0 %v642
        %793 = vmatpush1.bf16.msra.mxu0 %v641
        %794 = vmatprep.subr.bf16.mxu0 %v640
        %795 = vmatpush1.bf16.msra.mxu0 %v639
        %796 = vmatprep.subr.bf16.mxu0 %v638
        %797 = vmatpush1.bf16.msra.mxu0 %v637
        %798 = vmatprep.subr.bf16.mxu0 0
        %799 = vmatpush2.bf16.msra.mxu0 0
        %800 = vmatprep.subr.bf16.mxu0 0
        %801 = vmatpush2.bf16.msra.mxu0 0
        %802 = vmatprep.subr.bf16.mxu0 0
        %803 = vmatpush2.bf16.msra.mxu0 0
        %804 = vmatprep.subr.bf16.mxu0 0
        %805 = vmatpush2.bf16.msra.mxu0 0
        %806 = vmatprep.subr.bf16.mxu0 0
        %807 = vmatpush2.bf16.msra.mxu0 0
        %808 = vmatprep.subr.bf16.mxu0 0
        %809 = vmatpush2.bf16.msra.mxu0 0
        %810 = vmatprep.subr.bf16.mxu0 0
        %811 = vmatpush2.bf16.msra.mxu0 0
        %812 = vmatprep.subr.bf16.mxu0 0
        %813 = vmatpush2.bf16.msra.mxu0 0
        %814 = vmatprep.mubr.bf16.mxu0 0
        %815 = vmatmul.mubr.bf16.gmra.mxu0 %v389
        %v816 = vpop.f32.mrf.mxu0
        %v817 = vadd.f32 %v736, %v816
        %v818 = vpop.f32.mrf.mxu0
        %v819 = vadd.f32 %v738, %v818
        %v820 = vpop.f32.mrf.mxu0
        %v821 = vadd.f32 %v740, %v820
        %v822 = vpop.f32.mrf.mxu0
        %v823 = vadd.f32 %v742, %v822
        %824 = vmatprep.mubr.bf16.mxu0 0
        %825 = vmatmul.mubr.bf16.gmra.mxu0 %v391
        %v826 = vpop.f32.mrf.mxu0
        %v827 = vadd.f32 %v746, %v826
        %v828 = vpop.f32.mrf.mxu0
        %v829 = vadd.f32 %v748, %v828
        %v830 = vpop.f32.mrf.mxu0
        %v831 = vadd.f32 %v750, %v830
        %v832 = vpop.f32.mrf.mxu0
        %v833 = vadd.f32 %v752, %v832
        %834 = vmatprep.mubr.bf16.mxu0 0
        %835 = vmatmul.mubr.bf16.gmra.mxu0 %v393
        %v836 = vpop.f32.mrf.mxu0
        %v837 = vadd.f32 %v756, %v836
        %v838 = vpop.f32.mrf.mxu0
        %v839 = vadd.f32 %v758, %v838
        %v840 = vpop.f32.mrf.mxu0
        %v841 = vadd.f32 %v760, %v840
        %v842 = vpop.f32.mrf.mxu0
        %v843 = vadd.f32 %v762, %v842
        %844 = vmatprep.mubr.bf16.mxu0 0
        %845 = vmatmul.mubr.bf16.gmra.mxu0 %v395
        %v846 = vpop.f32.mrf.mxu0
        %v847 = vadd.f32 %v766, %v846
        %v848 = vpop.f32.mrf.mxu0
        %v849 = vadd.f32 %v768, %v848
        %v850 = vpop.f32.mrf.mxu0
        %v851 = vadd.f32 %v770, %v850
        %v852 = vpop.f32.mrf.mxu0
        %v853 = vadd.f32 %v772, %v852
        %854 = vmatprep.mubr.bf16.mxu0 0
        %855 = vmatmul.mubr.bf16.gmra.mxu0 %v394
        %v856 = vpop.f32.mrf.mxu0
        %v857 = vadd.f32 %v776, %v856
        %v858 = vpop.f32.mrf.mxu0
        %v859 = vadd.f32 %v778, %v858
        %v860 = vpop.f32.mrf.mxu0
        %v861 = vpop.f32.mrf.mxu0
        %862 = vdwg.mxu0
        %s863 = smul.u32 %s27, 64
        %s864 = ssub.s32 %s863, 1
        %v865 = vlaneseq
        %v866 = vshrl.u32 %v865, 7
        %v867 = vadd.s32 %v866, 8
        %v868 = vadd.s32 %v866, 16
        %v869 = vadd.s32 %v866, 24
        %v870 = vadd.s32 %v866, 32
        %v871 = vadd.s32 %v866, 40
        %v872 = vadd.s32 %v866, 48
        %v873 = vadd.s32 %v866, 56
        %v874 = vadd.s32 %v866, 64
        %v875 = vstv %s864
        %v876 = vadd.s32 %v875, %v866
        %v877 = vadd.s32 %v875, %v867
        %v878 = vadd.s32 %v875, %v868
        %v879 = vadd.s32 %v875, %v869
        %v880 = vadd.s32 %v875, %v870
        %v881 = vadd.s32 %v875, %v871
        %v882 = vadd.s32 %v875, %v872
        %v883 = vadd.s32 %v875, %v873
        %v884 = vadd.s32 %v875, %v874
        %vm885 = vcmp.ge.s32.totalorder %v876, 0
        %vm886 = vcmp.ge.s32.totalorder %v877, 0
        %vm887 = vcmp.ge.s32.totalorder %v878, 0
        %vm888 = vcmp.ge.s32.totalorder %v879, 0
        %vm889 = vcmp.ge.s32.totalorder %v880, 0
        %vm890 = vcmp.ge.s32.totalorder %v881, 0
        %vm891 = vcmp.ge.s32.totalorder %v882, 0
        %vm892 = vcmp.ge.s32.totalorder %v883, 0
        %vm893 = vcmp.ge.s32.totalorder %v884, 0
        %vm894 = vcmp.lt.s32.totalorder %v876, 128
        %vm895 = vcmp.lt.s32.totalorder %v877, 128
        %vm896 = vcmp.lt.s32.totalorder %v878, 128
        %vm897 = vcmp.lt.s32.totalorder %v879, 128
        %vm898 = vcmp.lt.s32.totalorder %v880, 128
        %vm899 = vcmp.lt.s32.totalorder %v881, 128
        %vm900 = vcmp.lt.s32.totalorder %v882, 128
        %vm901 = vcmp.lt.s32.totalorder %v883, 128
        %vm902 = vcmp.lt.s32.totalorder %v884, 128
        %vm903 = vmand %vm885, %vm894
        %vm904 = vmand %vm886, %vm895
        %vm905 = vmand %vm887, %vm896
        %vm906 = vmand %vm888, %vm897
        %vm907 = vmand %vm889, %vm898
        %vm908 = vmand %vm890, %vm899
        %vm909 = vmand %vm891, %vm900
        %vm910 = vmand %vm892, %vm901
        %vm911 = vmand %vm893, %vm902
        %vm912 = vcmp.gt.f32.partialorder %v817, 0.0
        %vm913 = vcmp.gt.f32.partialorder %v819, 0.0
        %vm914 = vcmp.gt.f32.partialorder %v821, 0.0
        %vm915 = vcmp.gt.f32.partialorder %v823, 0.0
        %vm916 = vcmp.gt.f32.partialorder %v827, 0.0
        %vm917 = vcmp.gt.f32.partialorder %v829, 0.0
        %vm918 = vcmp.gt.f32.partialorder %v831, 0.0
        %vm919 = vcmp.gt.f32.partialorder %v833, 0.0
        %vm920 = vcmp.gt.f32.partialorder %v837, 0.0
        %vm921 = vcmp.gt.f32.partialorder %v839, 0.0
        %vm922 = vcmp.gt.f32.partialorder %v841, 0.0
        %vm923 = vcmp.gt.f32.partialorder %v843, 0.0
        %vm924 = vcmp.gt.f32.partialorder %v847, 0.0
        %vm925 = vcmp.gt.f32.partialorder %v849, 0.0
        %vm926 = vcmp.gt.f32.partialorder %v851, 0.0
        %vm927 = vcmp.gt.f32.partialorder %v853, 0.0
        %vm928 = vcmp.gt.f32.partialorder %v857, 0.0
        %vm929 = vcmp.gt.f32.partialorder %v859, 0.0
        %v930 = vsel %vm903, 1, 0
        %v931 = vsel %vm904, 1, 0
        %v932 = vsel %vm905, 1, 0
        %v933 = vsel %vm906, 1, 0
        %v934 = vsel %vm907, 1, 0
        %v935 = vsel %vm908, 1, 0
        %v936 = vsel %vm909, 1, 0
        %v937 = vsel %vm910, 1, 0
        %v938 = vsel %vm911, 1, 0
        %vm939 = vcmp.eq.s32.totalorder %v930, 1
        %vm940 = vcmp.eq.s32.totalorder %v931, 1
        %vm941 = vcmp.eq.s32.totalorder %v932, 1
        %vm942 = vcmp.eq.s32.totalorder %v933, 1
        %vm943 = vcmp.eq.s32.totalorder %v934, 1
        %vm944 = vcmp.eq.s32.totalorder %v935, 1
        %vm945 = vcmp.eq.s32.totalorder %v936, 1
        %vm946 = vcmp.eq.s32.totalorder %v937, 1
        %vm947 = vcmp.eq.s32.totalorder %v938, 1
        %vm948 = vmand %vm939, %vm912
        %vm949 = vmand %vm939, %vm913
        %vm950 = vmand %vm940, %vm914
        %vm951 = vmand %vm940, %vm915
        %vm952 = vmand %vm941, %vm916
        %vm953 = vmand %vm941, %vm917
        %vm954 = vmand %vm942, %vm918
        %vm955 = vmand %vm942, %vm919
        %vm956 = vmand %vm943, %vm920
        %vm957 = vmand %vm943, %vm921
        %vm958 = vmand %vm944, %vm922
        %vm959 = vmand %vm944, %vm923
        %vm960 = vmand %vm945, %vm924
        %vm961 = vmand %vm945, %vm925
        %vm962 = vmand %vm946, %vm926
        %vm963 = vmand %vm946, %vm927
        %vm964 = vmand %vm947, %vm928
        %vm965 = vmand %vm947, %vm929
        %v966 = vsel %vm948, %v817, 0.0
        %v967 = vsel %vm949, %v819, 0.0
        %v968 = vsel %vm950, %v821, 0.0
        %v969 = vsel %vm951, %v823, 0.0
        %v970 = vsel %vm952, %v827, 0.0
        %v971 = vsel %vm953, %v829, 0.0
        %v972 = vsel %vm954, %v831, 0.0
        %v973 = vsel %vm955, %v833, 0.0
        %v974 = vsel %vm956, %v837, 0.0
        %v975 = vsel %vm957, %v839, 0.0
        %v976 = vsel %vm958, %v841, 0.0
        %v977 = vsel %vm959, %v843, 0.0
        %v978 = vsel %vm960, %v847, 0.0
        %v979 = vsel %vm961, %v849, 0.0
        %v980 = vsel %vm962, %v851, 0.0
        %v981 = vsel %vm963, %v853, 0.0
        %v982 = vsel %vm964, %v857, 0.0
        %v983 = vsel %vm965, %v859, 0.0
        %v984 = vpack.c.bf16 %v968, %v966
        %v985 = vpack.c.bf16 %v969, %v967
        %v986 = vpack.c.bf16 %v972, %v970
        %v987 = vpack.c.bf16 %v973, %v971
        %v988 = vpack.c.bf16 %v976, %v974
        %v989 = vpack.c.bf16 %v977, %v975
        %v990 = vpack.c.bf16 %v980, %v978
        %v991 = vpack.c.bf16 %v981, %v979
        %v992 = vpack.c.bf16 %v982, %v982
        %v993 = vpack.c.bf16 %v983, %v983
        %v995 = vshrl.u32 %v984, 16
        %v997 = vshll.u32 %v984, 16
        %v999 = vrot.slane %v997, 1
        %v1000 = vor.u32 %v995, %v999
        %v1002 = vshll.u32 %v986, 16
        %v1004 = vrot.slane %v1002, 1
        %v1005 = vsel %vm336, %v1000, %v1004
        %v1007 = vshrl.u32 %v985, 16
        %v1009 = vshll.u32 %v985, 16
        %v1011 = vrot.slane %v1009, 1
        %v1012 = vor.u32 %v1007, %v1011
        %v1014 = vshll.u32 %v987, 16
        %v1016 = vrot.slane %v1014, 1
        %v1017 = vsel %vm336, %v1012, %v1016
        %v1018 = vshrl.u32 %v986, 16
        %v1020 = vor.u32 %v1018, %v1004
        %v1022 = vshll.u32 %v988, 16
        %v1024 = vrot.slane %v1022, 1
        %v1025 = vsel %vm336, %v1020, %v1024
        %v1026 = vshrl.u32 %v987, 16
        %v1028 = vor.u32 %v1026, %v1016
        %v1030 = vshll.u32 %v989, 16
        %v1032 = vrot.slane %v1030, 1
        %v1033 = vsel %vm336, %v1028, %v1032
        %v1034 = vshrl.u32 %v988, 16
        %v1036 = vor.u32 %v1034, %v1024
        %v1038 = vshll.u32 %v990, 16
        %v1040 = vrot.slane %v1038, 1
        %v1041 = vsel %vm336, %v1036, %v1040
        %v1042 = vshrl.u32 %v989, 16
        %v1044 = vor.u32 %v1042, %v1032
        %v1046 = vshll.u32 %v991, 16
        %v1048 = vrot.slane %v1046, 1
        %v1049 = vsel %vm336, %v1044, %v1048
        %v1050 = vshrl.u32 %v990, 16
        %v1052 = vor.u32 %v1050, %v1040
        %v1054 = vshll.u32 %v992, 16
        %v1056 = vrot.slane %v1054, 1
        %v1057 = vsel %vm336, %v1052, %v1056
        %v1058 = vshrl.u32 %v991, 16
        %v1060 = vor.u32 %v1058, %v1048
        %v1062 = vshll.u32 %v993, 16
        %v1064 = vrot.slane %v1062, 1
        %v1065 = vsel %vm336, %v1060, %v1064
        %v1084 = vrot.slane %v984, 1
        %v1085 = vrot.slane %v986, 1
        %v1086 = vsel %vm386, %v1084, %v1085
        %v1087 = vrot.slane %v985, 1
        %v1088 = vrot.slane %v987, 1
        %v1089 = vsel %vm386, %v1087, %v1088
        %v1090 = vrot.slane %v988, 1
        %v1091 = vsel %vm386, %v1085, %v1090
        %v1092 = vrot.slane %v989, 1
        %v1093 = vsel %vm386, %v1088, %v1092
        %v1094 = vrot.slane %v990, 1
        %v1095 = vsel %vm386, %v1090, %v1094
        %v1096 = vrot.slane %v991, 1
        %v1097 = vsel %vm386, %v1092, %v1096
        %v1098 = vrot.slane %v992, 1
        %v1099 = vsel %vm386, %v1094, %v1098
        %v1100 = vrot.slane %v993, 1
        %v1101 = vsel %vm386, %v1096, %v1100
        %v1110 = vld [vmem:[#allocation2] sm:$0xf]
        %v1111 = vld [vmem:[#allocation2 + $0x4] sm:$0xf]
        %v1112 = vld [vmem:[#allocation2 + $0x8] sm:$0xf]
        %v1113 = vld [vmem:[#allocation2 + $0xc] sm:$0xf]
        %v1114 = vld [vmem:[#allocation2 + $0x10] sm:$0xf]
        %v1115 = vld [vmem:[#allocation2 + $0x14] sm:$0xf]
        %v1116 = vld [vmem:[#allocation2 + $0x18] sm:$0xf]
        %v1117 = vld [vmem:[#allocation2 + $0x1c] sm:$0xf]
        %v1118 = vld [vmem:[#allocation2 + $0x20] sm:$0xf]
        %v1119 = vld [vmem:[#allocation2 + $0x24] sm:$0xf]
        %v1120 = vld [vmem:[#allocation2 + $0x28] sm:$0xf]
        %v1121 = vld [vmem:[#allocation2 + $0x2c] sm:$0xf]
        %v1122 = vld [vmem:[#allocation2 + $0x30] sm:$0xf]
        %v1123 = vld [vmem:[#allocation2 + $0x34] sm:$0xf]
        %v1124 = vld [vmem:[#allocation2 + $0x38] sm:$0xf]
        %v1125 = vld [vmem:[#allocation2 + $0x3c] sm:$0xf]
        %v1126 = vld [vmem:[#allocation2 + $0x40] sm:$0xf]
        %v1127 = vld [vmem:[#allocation2 + $0x44] sm:$0xf]
        %v1128 = vld [vmem:[#allocation2 + $0x48] sm:$0xf]
        %v1129 = vld [vmem:[#allocation2 + $0x4c] sm:$0xf]
        %v1130 = vld [vmem:[#allocation2 + $0x50] sm:$0xf]
        %v1131 = vld [vmem:[#allocation2 + $0x54] sm:$0xf]
        %v1132 = vld [vmem:[#allocation2 + $0x58] sm:$0xf]
        %v1133 = vld [vmem:[#allocation2 + $0x5c] sm:$0xf]
        %v1134 = vld [vmem:[#allocation2 + $0x60] sm:$0xf]
        %v1135 = vld [vmem:[#allocation2 + $0x64] sm:$0xf]
        %v1136 = vld [vmem:[#allocation2 + $0x68] sm:$0xf]
        %v1137 = vld [vmem:[#allocation2 + $0x6c] sm:$0xf]
        %v1138 = vld [vmem:[#allocation2 + $0x70] sm:$0xf]
        %v1139 = vld [vmem:[#allocation2 + $0x74] sm:$0xf]
        %v1140 = vld [vmem:[#allocation2 + $0x78] sm:$0xf]
        %v1141 = vld [vmem:[#allocation2 + $0x7c] sm:$0xf]
        %v1142 = vld [vmem:[#allocation2 + $0x80] sm:$0xf]
        %v1143 = vld [vmem:[#allocation2 + $0x84] sm:$0xf]
        %v1144 = vld [vmem:[#allocation2 + $0x88] sm:$0xf]
        %v1145 = vld [vmem:[#allocation2 + $0x8c] sm:$0xf]
        %v1146 = vld [vmem:[#allocation2 + $0x90] sm:$0xf]
        %v1147 = vld [vmem:[#allocation2 + $0x94] sm:$0xf]
        %v1148 = vld [vmem:[#allocation2 + $0x98] sm:$0xf]
        %v1149 = vld [vmem:[#allocation2 + $0x9c] sm:$0xf]
        %v1150 = vld [vmem:[#allocation2 + $0xa0] sm:$0xf]
        %v1151 = vld [vmem:[#allocation2 + $0xa4] sm:$0xf]
        %v1152 = vld [vmem:[#allocation2 + $0xa8] sm:$0xf]
        %v1153 = vld [vmem:[#allocation2 + $0xac] sm:$0xf]
        %v1154 = vld [vmem:[#allocation2 + $0xb0] sm:$0xf]
        %v1155 = vld [vmem:[#allocation2 + $0xb4] sm:$0xf]
        %v1156 = vld [vmem:[#allocation2 + $0xb8] sm:$0xf]
        %v1157 = vld [vmem:[#allocation2 + $0xbc] sm:$0xf]
        %v1158 = vld [vmem:[#allocation2 + $0xc0] sm:$0xf]
        %v1159 = vld [vmem:[#allocation2 + $0xc4] sm:$0xf]
        %v1160 = vld [vmem:[#allocation2 + $0xc8] sm:$0xf]
        %v1161 = vld [vmem:[#allocation2 + $0xcc] sm:$0xf]
        %v1162 = vld [vmem:[#allocation2 + $0xd0] sm:$0xf]
        %v1163 = vld [vmem:[#allocation2 + $0xd4] sm:$0xf]
        %v1164 = vld [vmem:[#allocation2 + $0xd8] sm:$0xf]
        %v1165 = vld [vmem:[#allocation2 + $0xdc] sm:$0xf]
        %v1166 = vld [vmem:[#allocation2 + $0xe0] sm:$0xf]
        %v1167 = vld [vmem:[#allocation2 + $0xe4] sm:$0xf]
        %v1168 = vld [vmem:[#allocation2 + $0xe8] sm:$0xf]
        %v1169 = vld [vmem:[#allocation2 + $0xec] sm:$0xf]
        %v1170 = vld [vmem:[#allocation2 + $0xf0] sm:$0xf]
        %v1171 = vld [vmem:[#allocation2 + $0xf4] sm:$0xf]
        %v1172 = vld [vmem:[#allocation2 + $0xf8] sm:$0xf]
        %v1173 = vld [vmem:[#allocation2 + $0xfc] sm:$0xf]
        %v1174 = vld [vmem:[#allocation2 + $0x100] sm:$0xf]
        %v1175 = vld [vmem:[#allocation2 + $0x104] sm:$0xf]
        %v1176 = vld [vmem:[#allocation2 + $0x108] sm:$0xf]
        %v1177 = vld [vmem:[#allocation2 + $0x10c] sm:$0xf]
        %v1178 = vld [vmem:[#allocation2 + $0x110] sm:$0xf]
        %v1179 = vld [vmem:[#allocation2 + $0x114] sm:$0xf]
        %v1180 = vld [vmem:[#allocation2 + $0x118] sm:$0xf]
        %v1181 = vld [vmem:[#allocation2 + $0x11c] sm:$0xf]
        %v1182 = vld [vmem:[#allocation2 + $0x120] sm:$0xf]
        %v1183 = vld [vmem:[#allocation2 + $0x124] sm:$0xf]
        %v1184 = vld [vmem:[#allocation2 + $0x128] sm:$0xf]
        %v1185 = vld [vmem:[#allocation2 + $0x12c] sm:$0xf]
        %v1186 = vld [vmem:[#allocation2 + $0x130] sm:$0xf]
        %v1187 = vld [vmem:[#allocation2 + $0x134] sm:$0xf]
        %v1188 = vld [vmem:[#allocation2 + $0x138] sm:$0xf]
        %v1189 = vld [vmem:[#allocation2 + $0x13c] sm:$0xf]
        %v1190 = vld [vmem:[#allocation2 + $0x140] sm:$0xf]
        %v1191 = vld [vmem:[#allocation2 + $0x144] sm:$0xf]
        %v1192 = vld [vmem:[#allocation2 + $0x148] sm:$0xf]
        %v1193 = vld [vmem:[#allocation2 + $0x14c] sm:$0xf]
        %v1194 = vld [vmem:[#allocation2 + $0x150] sm:$0xf]
        %v1195 = vld [vmem:[#allocation2 + $0x154] sm:$0xf]
        %v1196 = vld [vmem:[#allocation2 + $0x158] sm:$0xf]
        %v1197 = vld [vmem:[#allocation2 + $0x15c] sm:$0xf]
        %v1198 = vld [vmem:[#allocation2 + $0x160] sm:$0xf]
        %v1199 = vld [vmem:[#allocation2 + $0x164] sm:$0xf]
        %v1200 = vld [vmem:[#allocation2 + $0x168] sm:$0xf]
        %v1201 = vld [vmem:[#allocation2 + $0x16c] sm:$0xf]
        %v1202 = vld [vmem:[#allocation2 + $0x170] sm:$0xf]
        %v1203 = vld [vmem:[#allocation2 + $0x174] sm:$0xf]
        %v1204 = vld [vmem:[#allocation2 + $0x178] sm:$0xf]
        %v1205 = vld [vmem:[#allocation2 + $0x17c] sm:$0xf]
        %v1206 = vld [vmem:[%s4] sm:$0x1]
        %v1208 = vlaneseq
        %v1209 = vshrl.u32 %v1208, 7
        %v1210 = vsub.s32 0, %v1209
        %v1211 = vrot.slane %v1206, %v1210
        %v1309 = vunpack.c.l.b16 %v1110
        %v1310 = vunpack.c.l.b16 %v1111
        %v1311 = vunpack.c.l.b16 %v1112
        %v1312 = vunpack.c.l.b16 %v1113
        %v1313 = vunpack.c.l.b16 %v1114
        %v1314 = vunpack.c.l.b16 %v1115
        %v1315 = vunpack.c.l.b16 %v1116
        %v1316 = vunpack.c.l.b16 %v1117
        %v1317 = vunpack.c.l.b16 %v1118
        %v1318 = vunpack.c.l.b16 %v1119
        %v1319 = vunpack.c.l.b16 %v1120
        %v1320 = vunpack.c.l.b16 %v1121
        %v1321 = vunpack.c.l.b16 %v1122
        %v1322 = vunpack.c.l.b16 %v1123
        %v1323 = vunpack.c.l.b16 %v1124
        %v1324 = vunpack.c.l.b16 %v1125
        %v1325 = vunpack.c.l.b16 %v1126
        %v1326 = vunpack.c.l.b16 %v1127
        %v1327 = vunpack.c.l.b16 %v1128
        %v1328 = vunpack.c.l.b16 %v1129
        %v1329 = vunpack.c.l.b16 %v1130
        %v1330 = vunpack.c.l.b16 %v1131
        %v1331 = vunpack.c.l.b16 %v1132
        %v1332 = vunpack.c.l.b16 %v1133
        %v1333 = vunpack.c.l.b16 %v1134
        %v1334 = vunpack.c.l.b16 %v1135
        %v1335 = vunpack.c.l.b16 %v1136
        %v1336 = vunpack.c.l.b16 %v1137
        %v1337 = vunpack.c.l.b16 %v1138
        %v1338 = vunpack.c.l.b16 %v1139
        %v1339 = vunpack.c.l.b16 %v1140
        %v1340 = vunpack.c.l.b16 %v1141
        %v1341 = vunpack.c.l.b16 %v1142
        %v1342 = vunpack.c.l.b16 %v1143
        %v1343 = vunpack.c.l.b16 %v1144
        %v1344 = vunpack.c.l.b16 %v1145
        %v1345 = vunpack.c.l.b16 %v1146
        %v1346 = vunpack.c.l.b16 %v1147
        %v1347 = vunpack.c.l.b16 %v1148
        %v1348 = vunpack.c.l.b16 %v1149
        %v1349 = vunpack.c.l.b16 %v1150
        %v1350 = vunpack.c.l.b16 %v1151
        %v1351 = vunpack.c.l.b16 %v1152
        %v1352 = vunpack.c.l.b16 %v1153
        %v1353 = vunpack.c.l.b16 %v1154
        %v1354 = vunpack.c.l.b16 %v1155
        %v1355 = vunpack.c.l.b16 %v1156
        %v1356 = vunpack.c.l.b16 %v1157
        %v1357 = vunpack.c.l.b16 %v1158
        %v1358 = vunpack.c.l.b16 %v1159
        %v1359 = vunpack.c.l.b16 %v1160
        %v1360 = vunpack.c.l.b16 %v1161
        %v1361 = vunpack.c.l.b16 %v1162
        %v1362 = vunpack.c.l.b16 %v1163
        %v1363 = vunpack.c.l.b16 %v1164
        %v1364 = vunpack.c.l.b16 %v1165
        %v1365 = vunpack.c.l.b16 %v1166
        %v1366 = vunpack.c.l.b16 %v1167
        %v1367 = vunpack.c.l.b16 %v1168
        %v1368 = vunpack.c.l.b16 %v1169
        %v1369 = vunpack.c.l.b16 %v1170
        %v1370 = vunpack.c.l.b16 %v1171
        %v1371 = vunpack.c.l.b16 %v1172
        %v1372 = vunpack.c.l.b16 %v1173
        %v1373 = vunpack.c.l.b16 %v1174
        %v1374 = vunpack.c.l.b16 %v1175
        %v1375 = vunpack.c.l.b16 %v1176
        %v1376 = vunpack.c.l.b16 %v1177
        %v1377 = vunpack.c.l.b16 %v1178
        %v1378 = vunpack.c.l.b16 %v1179
        %v1379 = vunpack.c.l.b16 %v1180
        %v1380 = vunpack.c.l.b16 %v1181
        %v1381 = vunpack.c.l.b16 %v1182
        %v1382 = vunpack.c.l.b16 %v1183
        %v1383 = vunpack.c.l.b16 %v1184
        %v1384 = vunpack.c.l.b16 %v1185
        %v1385 = vunpack.c.l.b16 %v1186
        %v1386 = vunpack.c.l.b16 %v1187
        %v1387 = vunpack.c.l.b16 %v1188
        %v1388 = vunpack.c.l.b16 %v1189
        %v1389 = vunpack.c.l.b16 %v1190
        %v1390 = vunpack.c.l.b16 %v1191
        %v1391 = vunpack.c.l.b16 %v1192
        %v1392 = vunpack.c.l.b16 %v1193
        %v1393 = vunpack.c.l.b16 %v1194
        %v1394 = vunpack.c.l.b16 %v1195
        %v1395 = vunpack.c.l.b16 %v1196
        %v1396 = vunpack.c.l.b16 %v1197
        %v1397 = vunpack.c.l.b16 %v1198
        %v1398 = vunpack.c.l.b16 %v1199
        %v1399 = vunpack.c.l.b16 %v1200
        %v1400 = vunpack.c.l.b16 %v1201
        %v1401 = vunpack.c.l.b16 %v1202
        %v1402 = vunpack.c.l.b16 %v1203
        %v1403 = vunpack.c.l.b16 %v1204
        %v1404 = vunpack.c.l.b16 %v1205
        %v1405 = vpack.c.b16 %v1310, %v1309
        %v1406 = vpack.c.b16 %v1312, %v1311
        %v1407 = vpack.c.b16 %v1314, %v1313
        %v1408 = vpack.c.b16 %v1316, %v1315
        %v1409 = vpack.c.b16 %v1318, %v1317
        %v1410 = vpack.c.b16 %v1320, %v1319
        %v1411 = vpack.c.b16 %v1322, %v1321
        %v1412 = vpack.c.b16 %v1324, %v1323
        %v1413 = vpack.c.b16 %v1326, %v1325
        %v1414 = vpack.c.b16 %v1328, %v1327
        %v1415 = vpack.c.b16 %v1330, %v1329
        %v1416 = vpack.c.b16 %v1332, %v1331
        %v1417 = vpack.c.b16 %v1334, %v1333
        %v1418 = vpack.c.b16 %v1336, %v1335
        %v1419 = vpack.c.b16 %v1338, %v1337
        %v1420 = vpack.c.b16 %v1340, %v1339
        %v1421 = vpack.c.b16 %v1342, %v1341
        %v1422 = vpack.c.b16 %v1344, %v1343
        %v1423 = vpack.c.b16 %v1346, %v1345
        %v1424 = vpack.c.b16 %v1348, %v1347
        %v1425 = vpack.c.b16 %v1350, %v1349
        %v1426 = vpack.c.b16 %v1352, %v1351
        %v1427 = vpack.c.b16 %v1354, %v1353
        %v1428 = vpack.c.b16 %v1356, %v1355
        %v1429 = vpack.c.b16 %v1358, %v1357
        %v1430 = vpack.c.b16 %v1360, %v1359
        %v1431 = vpack.c.b16 %v1362, %v1361
        %v1432 = vpack.c.b16 %v1364, %v1363
        %v1433 = vpack.c.b16 %v1366, %v1365
        %v1434 = vpack.c.b16 %v1368, %v1367
        %v1435 = vpack.c.b16 %v1370, %v1369
        %v1436 = vpack.c.b16 %v1372, %v1371
        %v1437 = vpack.c.b16 %v1374, %v1373
        %v1438 = vpack.c.b16 %v1376, %v1375
        %v1439 = vpack.c.b16 %v1378, %v1377
        %v1440 = vpack.c.b16 %v1380, %v1379
        %v1441 = vpack.c.b16 %v1382, %v1381
        %v1442 = vpack.c.b16 %v1384, %v1383
        %v1443 = vpack.c.b16 %v1386, %v1385
        %v1444 = vpack.c.b16 %v1388, %v1387
        %v1445 = vpack.c.b16 %v1390, %v1389
        %v1446 = vpack.c.b16 %v1392, %v1391
        %v1447 = vpack.c.b16 %v1394, %v1393
        %v1448 = vpack.c.b16 %v1396, %v1395
        %v1449 = vpack.c.b16 %v1398, %v1397
        %v1450 = vpack.c.b16 %v1400, %v1399
        %v1451 = vpack.c.b16 %v1402, %v1401
        %v1452 = vpack.c.b16 %v1404, %v1403
        %1501 = vmatprep.subr.bf16.mxu0 0
        %1502 = vmatpush1.bf16.msra.mxu0 %v1412
        %1503 = vmatprep.subr.bf16.mxu0 0
        %1504 = vmatpush1.bf16.msra.mxu0 %v1411
        %1505 = vmatprep.subr.bf16.mxu0 0
        %1506 = vmatpush1.bf16.msra.mxu0 %v1410
        %1507 = vmatprep.subr.bf16.mxu0 0
        %1508 = vmatpush1.bf16.msra.mxu0 %v1409
        %1509 = vmatprep.subr.bf16.mxu0 0
        %1510 = vmatpush1.bf16.msra.mxu0 %v1408
        %1511 = vmatprep.subr.bf16.mxu0 0
        %1512 = vmatpush1.bf16.msra.mxu0 %v1407
        %1513 = vmatprep.subr.bf16.mxu0 0
        %1514 = vmatpush1.bf16.msra.mxu0 %v1406
        %1515 = vmatprep.subr.bf16.mxu0 0
        %1516 = vmatpush1.bf16.msra.mxu0 %v1405
        %1517 = vmatprep.subr.bf16.mxu0 0
        %1518 = vmatpush2.bf16.msra.mxu0 %v1420
        %1519 = vmatprep.subr.bf16.mxu0 0
        %1520 = vmatpush2.bf16.msra.mxu0 %v1419
        %1521 = vmatprep.subr.bf16.mxu0 0
        %1522 = vmatpush2.bf16.msra.mxu0 %v1418
        %1523 = vmatprep.subr.bf16.mxu0 0
        %1524 = vmatpush2.bf16.msra.mxu0 %v1417
        %1525 = vmatprep.subr.bf16.mxu0 0
        %1526 = vmatpush2.bf16.msra.mxu0 %v1416
        %1527 = vmatprep.subr.bf16.mxu0 0
        %1528 = vmatpush2.bf16.msra.mxu0 %v1415
        %1529 = vmatprep.subr.bf16.mxu0 0
        %1530 = vmatpush2.bf16.msra.mxu0 %v1414
        %1531 = vmatprep.subr.bf16.mxu0 0
        %1532 = vmatpush2.bf16.msra.mxu0 %v1413
        %1533 = vmatprep.mubr.bf16.mxu0 %v985
        %1534 = vmatmul.mubr.bf16.gmra.mxu0 %v984
        %v1535 = vpop.f32.mrf.mxu0
        %v1536 = vadd.f32 %v1211, %v1535
        %v1537 = vpop.f32.mrf.mxu0
        %v1538 = vpop.f32.mrf.mxu0
        %v1539 = vadd.f32 %v1211, %v1538
        %v1540 = vpop.f32.mrf.mxu0
        %1541 = vmatprep.mubr.bf16.mxu0 %v987
        %1542 = vmatmul.mubr.bf16.gmra.mxu0 %v986
        %v1543 = vpop.f32.mrf.mxu0
        %v1544 = vadd.f32 %v1211, %v1543
        %v1545 = vpop.f32.mrf.mxu0
        %v1546 = vpop.f32.mrf.mxu0
        %v1547 = vadd.f32 %v1211, %v1546
        %v1548 = vpop.f32.mrf.mxu0
        %1549 = vmatprep.mubr.bf16.mxu0 %v989
        %1550 = vmatmul.mubr.bf16.gmra.mxu0 %v988
        %v1551 = vpop.f32.mrf.mxu0
        %v1552 = vadd.f32 %v1211, %v1551
        %v1553 = vpop.f32.mrf.mxu0
        %v1554 = vpop.f32.mrf.mxu0
        %v1555 = vadd.f32 %v1211, %v1554
        %v1556 = vpop.f32.mrf.mxu0
        %1557 = vmatprep.mubr.bf16.mxu0 %v991
        %1558 = vmatmul.mubr.bf16.gmra.mxu0 %v990
        %v1559 = vpop.f32.mrf.mxu0
        %v1560 = vadd.f32 %v1211, %v1559
        %v1561 = vpop.f32.mrf.mxu0
        %v1562 = vpop.f32.mrf.mxu0
        %v1563 = vadd.f32 %v1211, %v1562
        %v1564 = vpop.f32.mrf.mxu0
        %1565 = vdwg.mxu0
        %1566 = vmatprep.subr.bf16.mxu0 0
        %1567 = vmatpush1.bf16.msra.mxu0 %v1428
        %1568 = vmatprep.subr.bf16.mxu0 0
        %1569 = vmatpush1.bf16.msra.mxu0 %v1427
        %1570 = vmatprep.subr.bf16.mxu0 0
        %1571 = vmatpush1.bf16.msra.mxu0 %v1426
        %1572 = vmatprep.subr.bf16.mxu0 0
        %1573 = vmatpush1.bf16.msra.mxu0 %v1425
        %1574 = vmatprep.subr.bf16.mxu0 0
        %1575 = vmatpush1.bf16.msra.mxu0 %v1424
        %1576 = vmatprep.subr.bf16.mxu0 0
        %1577 = vmatpush1.bf16.msra.mxu0 %v1423
        %1578 = vmatprep.subr.bf16.mxu0 0
        %1579 = vmatpush1.bf16.msra.mxu0 %v1422
        %1580 = vmatprep.subr.bf16.mxu0 0
        %1581 = vmatpush1.bf16.msra.mxu0 %v1421
        %1582 = vmatprep.subr.bf16.mxu0 0
        %1583 = vmatpush2.bf16.msra.mxu0 %v1436
        %1584 = vmatprep.subr.bf16.mxu0 0
        %1585 = vmatpush2.bf16.msra.mxu0 %v1435
        %1586 = vmatprep.subr.bf16.mxu0 0
        %1587 = vmatpush2.bf16.msra.mxu0 %v1434
        %1588 = vmatprep.subr.bf16.mxu0 0
        %1589 = vmatpush2.bf16.msra.mxu0 %v1433
        %1590 = vmatprep.subr.bf16.mxu0 0
        %1591 = vmatpush2.bf16.msra.mxu0 %v1432
        %1592 = vmatprep.subr.bf16.mxu0 0
        %1593 = vmatpush2.bf16.msra.mxu0 %v1431
        %1594 = vmatprep.subr.bf16.mxu0 0
        %1595 = vmatpush2.bf16.msra.mxu0 %v1430
        %1596 = vmatprep.subr.bf16.mxu0 0
        %1597 = vmatpush2.bf16.msra.mxu0 %v1429
        %1598 = vmatprep.mubr.bf16.mxu0 %v1017
        %1599 = vmatmul.mubr.bf16.gmra.mxu0 %v1005
        %v1600 = vpop.f32.mrf.mxu0
        %v1601 = vadd.f32 %v1536, %v1600
        %v1602 = vpop.f32.mrf.mxu0
        %v1603 = vpop.f32.mrf.mxu0
        %v1604 = vadd.f32 %v1539, %v1603
        %v1605 = vpop.f32.mrf.mxu0
        %1606 = vmatprep.mubr.bf16.mxu0 %v1033
        %1607 = vmatmul.mubr.bf16.gmra.mxu0 %v1025
        %v1608 = vpop.f32.mrf.mxu0
        %v1609 = vadd.f32 %v1544, %v1608
        %v1610 = vpop.f32.mrf.mxu0
        %v1611 = vpop.f32.mrf.mxu0
        %v1612 = vadd.f32 %v1547, %v1611
        %v1613 = vpop.f32.mrf.mxu0
        %1614 = vmatprep.mubr.bf16.mxu0 %v1049
        %1615 = vmatmul.mubr.bf16.gmra.mxu0 %v1041
        %v1616 = vpop.f32.mrf.mxu0
        %v1617 = vadd.f32 %v1552, %v1616
        %v1618 = vpop.f32.mrf.mxu0
        %v1619 = vpop.f32.mrf.mxu0
        %v1620 = vadd.f32 %v1555, %v1619
        %v1621 = vpop.f32.mrf.mxu0
        %1622 = vmatprep.mubr.bf16.mxu0 %v1065
        %1623 = vmatmul.mubr.bf16.gmra.mxu0 %v1057
        %v1624 = vpop.f32.mrf.mxu0
        %v1625 = vadd.f32 %v1560, %v1624
        %v1626 = vpop.f32.mrf.mxu0
        %v1627 = vpop.f32.mrf.mxu0
        %v1628 = vadd.f32 %v1563, %v1627
        %v1629 = vpop.f32.mrf.mxu0
        %1630 = vdwg.mxu0
        %1631 = vmatprep.subr.bf16.mxu0 0
        %1632 = vmatpush1.bf16.msra.mxu0 %v1444
        %1633 = vmatprep.subr.bf16.mxu0 0
        %1634 = vmatpush1.bf16.msra.mxu0 %v1443
        %1635 = vmatprep.subr.bf16.mxu0 0
        %1636 = vmatpush1.bf16.msra.mxu0 %v1442
        %1637 = vmatprep.subr.bf16.mxu0 0
        %1638 = vmatpush1.bf16.msra.mxu0 %v1441
        %1639 = vmatprep.subr.bf16.mxu0 0
        %1640 = vmatpush1.bf16.msra.mxu0 %v1440
        %1641 = vmatprep.subr.bf16.mxu0 0
        %1642 = vmatpush1.bf16.msra.mxu0 %v1439
        %1643 = vmatprep.subr.bf16.mxu0 0
        %1644 = vmatpush1.bf16.msra.mxu0 %v1438
        %1645 = vmatprep.subr.bf16.mxu0 0
        %1646 = vmatpush1.bf16.msra.mxu0 %v1437
        %1647 = vmatprep.subr.bf16.mxu0 0
        %1648 = vmatpush2.bf16.msra.mxu0 %v1452
        %1649 = vmatprep.subr.bf16.mxu0 0
        %1650 = vmatpush2.bf16.msra.mxu0 %v1451
        %1651 = vmatprep.subr.bf16.mxu0 0
        %1652 = vmatpush2.bf16.msra.mxu0 %v1450
        %1653 = vmatprep.subr.bf16.mxu0 0
        %1654 = vmatpush2.bf16.msra.mxu0 %v1449
        %1655 = vmatprep.subr.bf16.mxu0 0
        %1656 = vmatpush2.bf16.msra.mxu0 %v1448
        %1657 = vmatprep.subr.bf16.mxu0 0
        %1658 = vmatpush2.bf16.msra.mxu0 %v1447
        %1659 = vmatprep.subr.bf16.mxu0 0
        %1660 = vmatpush2.bf16.msra.mxu0 %v1446
        %1661 = vmatprep.subr.bf16.mxu0 0
        %1662 = vmatpush2.bf16.msra.mxu0 %v1445
        %1663 = vmatprep.mubr.bf16.mxu0 %v1089
        %1664 = vmatmul.mubr.bf16.gmra.mxu0 %v1086
        %v1665 = vpop.f32.mrf.mxu0
        %v1666 = vadd.f32 %v1601, %v1665
        %v1667 = vpop.f32.mrf.mxu0
        %v1668 = vpop.f32.mrf.mxu0
        %v1669 = vadd.f32 %v1604, %v1668
        %v1670 = vpop.f32.mrf.mxu0
        %1671 = vmatprep.mubr.bf16.mxu0 %v1093
        %1672 = vmatmul.mubr.bf16.gmra.mxu0 %v1091
        %v1673 = vpop.f32.mrf.mxu0
        %v1674 = vadd.f32 %v1609, %v1673
        %v1675 = vpop.f32.mrf.mxu0
        %v1676 = vpop.f32.mrf.mxu0
        %v1677 = vadd.f32 %v1612, %v1676
        %v1678 = vpop.f32.mrf.mxu0
        %1679 = vmatprep.mubr.bf16.mxu0 %v1097
        %1680 = vmatmul.mubr.bf16.gmra.mxu0 %v1095
        %v1681 = vpop.f32.mrf.mxu0
        %v1682 = vadd.f32 %v1617, %v1681
        %v1683 = vpop.f32.mrf.mxu0
        %v1684 = vpop.f32.mrf.mxu0
        %v1685 = vadd.f32 %v1620, %v1684
        %v1686 = vpop.f32.mrf.mxu0
        %1687 = vmatprep.mubr.bf16.mxu0 %v1101
        %1688 = vmatmul.mubr.bf16.gmra.mxu0 %v1099
        %v1689 = vpop.f32.mrf.mxu0
        %v1690 = vadd.f32 %v1625, %v1689
        %v1691 = vpop.f32.mrf.mxu0
        %v1692 = vpop.f32.mrf.mxu0
        %v1693 = vadd.f32 %v1628, %v1692
        %v1694 = vpop.f32.mrf.mxu0
        %1695 = vdwg.mxu0
        %vm1705 = vcmask 1045504
        %v1706 = vrot.slane %v322, 2
        %v1707 = vrot.slane %v323, 2
        %v1708 = vsel %vm1705, %v1706, %v1707
        %v1709 = vrot.slane %v324, 2
        %v1710 = vsel %vm1705, %v1707, %v1709
        %v1711 = vrot.slane %v325, 2
        %v1712 = vsel %vm1705, %v1709, %v1711
        %v1713 = vrot.slane %v326, 2
        %v1714 = vsel %vm1705, %v1711, %v1713
        %v1715 = vrot.slane %v327, 2
        %v1716 = vsel %vm1705, %v1713, %v1715
        %v1717 = vrot.slane %v328, 2
        %v1718 = vsel %vm1705, %v1715, %v1717
        %v1719 = vrot.slane %v329, 2
        %v1720 = vsel %vm1705, %v1717, %v1719
        %v1721 = vrot.slane %v330, 2
        %v1722 = vsel %vm1705, %v1719, %v1721
        %v1731 = vadd.f32 %v1666, %v1708
        %v1732 = vadd.f32 %v1669, %v1710
        %v1733 = vadd.f32 %v1674, %v1712
        %v1734 = vadd.f32 %v1677, %v1714
        %v1735 = vadd.f32 %v1682, %v1716
        %v1736 = vadd.f32 %v1685, %v1718
        %v1737 = vadd.f32 %v1690, %v1720
        %v1738 = vadd.f32 %v1693, %v1722
        %1739 = vadd.xlane.f32.xlu0 %v1731
        %v1740 = vpop.xlane.xlu0 %1739
        %1741 = vadd.xlane.f32.xlu0 %v1732
        %v1742 = vpop.xlane.xlu0 %1741
        %1743 = vadd.xlane.f32.xlu0 %v1733
        %v1744 = vpop.xlane.xlu0 %1743
        %1745 = vadd.xlane.f32.xlu0 %v1734
        %v1746 = vpop.xlane.xlu0 %1745
        %1747 = vadd.xlane.f32.xlu0 %v1735
        %v1748 = vpop.xlane.xlu0 %1747
        %1749 = vadd.xlane.f32.xlu0 %v1736
        %v1750 = vpop.xlane.xlu0 %1749
        %1751 = vadd.xlane.f32.xlu0 %v1737
        %v1752 = vpop.xlane.xlu0 %1751
        %1753 = vadd.xlane.f32.xlu0 %v1738
        %v1754 = vpop.xlane.xlu0 %1753
        %v1755 = vrcp.pop 128.0
        %v1756 = vmul.f32 %v1740, %v1755
        %v1757 = vmul.f32 %v1742, %v1755
        %v1758 = vmul.f32 %v1744, %v1755
        %v1759 = vmul.f32 %v1746, %v1755
        %v1760 = vmul.f32 %v1748, %v1755
        %v1761 = vmul.f32 %v1750, %v1755
        %v1762 = vmul.f32 %v1752, %v1755
        %v1763 = vmul.f32 %v1754, %v1755
        %v1764 = vsub.f32 %v1731, %v1756
        %v1765 = vsub.f32 %v1732, %v1757
        %v1766 = vsub.f32 %v1733, %v1758
        %v1767 = vsub.f32 %v1734, %v1759
        %v1768 = vsub.f32 %v1735, %v1760
        %v1769 = vsub.f32 %v1736, %v1761
        %v1770 = vsub.f32 %v1737, %v1762
        %v1771 = vsub.f32 %v1738, %v1763
        %v1772 = vmul.f32 %v1764, %v1764
        %v1773 = vmul.f32 %v1765, %v1765
        %v1774 = vmul.f32 %v1766, %v1766
        %v1775 = vmul.f32 %v1767, %v1767
        %v1776 = vmul.f32 %v1768, %v1768
        %v1777 = vmul.f32 %v1769, %v1769
        %v1778 = vmul.f32 %v1770, %v1770
        %v1779 = vmul.f32 %v1771, %v1771
        %1780 = vadd.xlane.f32.xlu0 %v1772
        %v1781 = vpop.xlane.xlu0 %1780
        %1782 = vadd.xlane.f32.xlu0 %v1773
        %v1783 = vpop.xlane.xlu0 %1782
        %1784 = vadd.xlane.f32.xlu0 %v1774
        %v1785 = vpop.xlane.xlu0 %1784
        %1786 = vadd.xlane.f32.xlu0 %v1775
        %v1787 = vpop.xlane.xlu0 %1786
        %1788 = vadd.xlane.f32.xlu0 %v1776
        %v1789 = vpop.xlane.xlu0 %1788
        %1790 = vadd.xlane.f32.xlu0 %v1777
        %v1791 = vpop.xlane.xlu0 %1790
        %1792 = vadd.xlane.f32.xlu0 %v1778
        %v1793 = vpop.xlane.xlu0 %1792
        %1794 = vadd.xlane.f32.xlu0 %v1779
        %v1795 = vpop.xlane.xlu0 %1794
        %v1796 = vmul.f32 %v1781, %v1755
        %v1797 = vmul.f32 %v1783, %v1755
        %v1798 = vmul.f32 %v1785, %v1755
        %v1799 = vmul.f32 %v1787, %v1755
        %v1800 = vmul.f32 %v1789, %v1755
        %v1801 = vmul.f32 %v1791, %v1755
        %v1802 = vmul.f32 %v1793, %v1755
        %v1803 = vmul.f32 %v1795, %v1755
        %v1804 = vadd.f32 %v1796, 1e-05
        %v1805 = vadd.f32 %v1797, 1e-05
        %v1806 = vadd.f32 %v1798, 1e-05
        %v1807 = vadd.f32 %v1799, 1e-05
        %v1808 = vadd.f32 %v1800, 1e-05
        %v1809 = vadd.f32 %v1801, 1e-05
        %v1810 = vadd.f32 %v1802, 1e-05
        %v1811 = vadd.f32 %v1803, 1e-05
        %v1812 = vrsqrt.pop %v1804
        %v1813 = vrsqrt.pop %v1805
        %v1814 = vrsqrt.pop %v1806
        %v1815 = vrsqrt.pop %v1807
        %v1816 = vrsqrt.pop %v1808
        %v1817 = vrsqrt.pop %v1809
        %v1818 = vrsqrt.pop %v1810
        %v1819 = vrsqrt.pop %v1811
        %v1820 = vmul.f32 %v1764, %v1812
        %v1821 = vmul.f32 %v1765, %v1813
        %v1822 = vmul.f32 %v1766, %v1814
        %v1823 = vmul.f32 %v1767, %v1815
        %v1824 = vmul.f32 %v1768, %v1816
        %v1825 = vmul.f32 %v1769, %v1817
        %v1826 = vmul.f32 %v1770, %v1818
        %v1827 = vmul.f32 %v1771, %v1819
        %v1828 = vld [vmem:[%s5] sm:$0x1]
        %v1830 = vlaneseq
        %v1831 = vshrl.u32 %v1830, 7
        %v1832 = vsub.s32 0, %v1831
        %v1833 = vrot.slane %v1828, %v1832
        %v1835 = vmul.f32 %v1820, %v1833
        %v1836 = vmul.f32 %v1821, %v1833
        %v1837 = vmul.f32 %v1822, %v1833
        %v1838 = vmul.f32 %v1823, %v1833
        %v1839 = vmul.f32 %v1824, %v1833
        %v1840 = vmul.f32 %v1825, %v1833
        %v1841 = vmul.f32 %v1826, %v1833
        %v1842 = vmul.f32 %v1827, %v1833
        %v1843 = vld [vmem:[%s6] sm:$0x1]
        %v1845 = vlaneseq
        %v1846 = vshrl.u32 %v1845, 7
        %v1847 = vsub.s32 0, %v1846
        %v1848 = vrot.slane %v1843, %v1847
        %v1850 = vadd.f32 %v1835, %v1848
        %v1851 = vadd.f32 %v1836, %v1848
        %v1852 = vadd.f32 %v1837, %v1848
        %v1853 = vadd.f32 %v1838, %v1848
        %v1854 = vadd.f32 %v1839, %v1848
        %v1855 = vadd.f32 %v1840, %v1848
        %v1856 = vadd.f32 %v1841, %v1848
        %v1857 = vadd.f32 %v1842, %v1848
        %1858 = vst [vmem:[%s310] sm:$0xff] %v1850
        %1859 = vst [vmem:[%s310 + $0x8] sm:$0xff] %v1851
        %1860 = vst [vmem:[%s310 + $0x10] sm:$0xff] %v1852
        %1861 = vst [vmem:[%s310 + $0x18] sm:$0xff] %v1853
        %1862 = vst [vmem:[%s310 + $0x20] sm:$0xff] %v1854
        %1863 = vst [vmem:[%s310 + $0x28] sm:$0xff] %v1855
        %1864 = vst [vmem:[%s310 + $0x30] sm:$0xff] %v1856
        %1865 = vst [vmem:[%s310 + $0x38] sm:$0xff] %v1857
        %s1866 = sand.u32 %s198, 1
        %s1867 = scalar_lea.sflag [#allocation4], %s1866
        %s1868 = sand.u32 %s198, 1
        %s1869 = smul.addr %s1868, 64
        %s1870 = scalar_lea.vmem [#allocation5], %s1869
        // Predicated region
        $region53: #{tpu_custom_call.1} parent=47 // pred_check
          %p1871 = pneg %p208
        $region54: #{tpu_custom_call.1} parent=47 // pred_check_branch
          %1873 = sbr.rel (%p1871) target = $region56
        $region55: #{tpu_custom_call.1} parent=47 // pred_region
          %s1874 = smul.u32 8, %s27
          %s1876 = ssub.s32 1024, 1024
          %1877 = vsyncadd %s1867, %s1876
          %s1878 = smul.addr %s26, 16
          %s1879 = sadd.s32 %s1874, %s1878
          %s1880 = smul.addr %s1879, 128
          %s1881 = scalar_lea.hbm %s7, %s1880
          %s1882 = sshll.u32 %s1870, 4
          %s1883 = int_to_ptr.vmem [resolvable:$true] %s1882
          %1888 = dma.vmem_to_hbm [thread:$0]  %s1883, 1024, %s1881, %s1867, 128, 128, 8
        $region56: #{tpu_custom_call.1} parent=47 // pred_fallthru
          _
      $region48: #{tpu_custom_call.1} parent=5 // pred_fallthru
        _
      %p1889 = scmp.le.s32.totalorder 2, %s17
      // Predicated region
      $region57: #{tpu_custom_call.1} parent=5 // pred_check
        %p1890 = pneg %p1889
      $region58: #{tpu_custom_call.1} parent=5 // pred_check_branch
        %1892 = sbr.rel (%p1890) target = $region60
      $region59: #{tpu_custom_call.1} parent=5 // pred_region
        %s1893 = ssub.s32 %s17, 2
        // Predicated region
        $region61: #{tpu_custom_call.1} parent=59 // pred_check
          %p1894 = pneg %p214
        $region62: #{tpu_custom_call.1} parent=59 // pred_check_branch
          %1896 = sbr.rel (%p1894) target = $region64
        $region63: #{tpu_custom_call.1} parent=59 // pred_region
          %s1897 = sand.u32 %s199, 1
          %s1898 = scalar_lea.sflag [#allocation4], %s1897
          %s1899 = sand.u32 %s199, 1
          %s1900 = smul.addr %s1899, 64
          %s1901 = scalar_lea.vmem [#allocation5], %s1900
          %1902 = dma.done %s1898, 1024
        $region64: #{tpu_custom_call.1} parent=59 // pred_fallthru
          _
      $region60: #{tpu_custom_call.1} parent=5 // pred_fallthru
        _
    $region6: #{tpu_custom_call.1} parent=1 // loop_footer
      %s21 = sadd.s32 1, %s17
    $region7: #{tpu_custom_call.1} parent=1 // loop_footer_branch
      %16 = sbr.rel target = $region3
    $region8: #{tpu_custom_call.1} parent=1 // loop_exit
      _
    %1903 = vsyncpa [#allocation3], 1
    %s1904 = scalar_lea.sflag [#allocation3], 1
    %1905 = vsyncpa %s1904, 1
    %1906 = vsyncpa [#allocation4], 1
    %s1907 = scalar_lea.sflag [#allocation4], 1
    %1908 = vsyncpa %s1907, 1

</llo_original>
